<compile_context>
chip_gen: v5e
topology: v5e:2x2
jax: 0.10.0
libtpu: 0.0.40
codegen_flags: <defaults>
</compile_context>

<pallas_src>
import functools

import jax
import jax.numpy as jnp
from jax import lax
from jax.experimental import pallas as pl
from jax.experimental.pallas import tpu as pltpu


# ----------------------------- Pallas kernel -------------------------------- #

def _basic_block_kernel(x_ref, w_ref, b_ref, g_ref, bt_ref, out_ref, *,
                        stride, eps, use_bn, act, kh_size, kw_size, hout, wout):
    """All operands live fully in VMEM (shapes are small).

    x_ref  : (N, H+2p, W+2p, Cin)        padded input, NHWC
    w_ref  : (KH*KW*Cin, 2*Cout)         both convs' weights, concatenated on Cout
    b_ref / g_ref / bt_ref : (2*Cout, 1) conv bias / BN gamma / BN beta (concat)
    out_ref: (Cout, N*Hout*Wout)         channel-major, lane-dense output
    """
    N, _, _, Cin = x_ref.shape
    Cout, M = out_ref.shape                      # M = N * Hout * Wout

    x = x_ref[...].astype(jnp.float32)

    # --- im2col: one (M, KH*KW*Cin) patch matrix for both branches ---------- #
    patches = []
    for kh in range(kh_size):
        for kw in range(kw_size):
            if stride == 1:
                win = x[:, kh:kh + hout, kw:kw + wout, :]
            else:
                # TODO(synk): stride > 1 not exercised by the toy test; strided
                # window read straight from the ref.
                win = x_ref[:, pl.ds(kh, hout, stride=stride),
                            pl.ds(kw, wout, stride=stride), :].astype(jnp.float32)
            patches.append(win.reshape(M, Cin))
    col = jnp.concatenate(patches, axis=1)       # (M, KH*KW*Cin)

    # --- single MXU dot producing both branches ----------------------------- #
    y = jnp.dot(col, w_ref[...], preferred_element_type=jnp.float32)  # (M, 2C)
    # Transpose early: every downstream VPU/XLU op becomes lane-dense and the
    # final store is an unmasked dense (Cout, M) store.
    y = y.T                                      # (2C, M)

    # --- BatchNorm (training-mode batch stats), folded scale/shift ---------- #
    if use_bn:
        # Conv bias is skipped entirely: it cancels under mean subtraction.
        inv_m = 1.0 / M
        mean = jnp.sum(y, axis=1, keepdims=True) * inv_m                   # (2C,1)
        var = jnp.sum(y * y, axis=1, keepdims=True) * inv_m - mean * mean  # (2C,1)
        scale = g_ref[...] * lax.rsqrt(var + eps)                          # (2C,1)
        shift = bt_ref[...] - mean * scale                                 # (2C,1)
        y = y * scale + shift
    else:
        y = y + b_ref[...]                       # bias only matters without BN

    # --- residual add of the two branches + activation ---------------------- #
    o = y[:Cout, :] + y[Cout:, :]                # (Cout, M), sublane slice

    if act == "relu":
        o = jnp.maximum(o, 0.0)
    elif act == "tanh":
        o = jnp.tanh(o)                          # EUP
    elif act == "sigmoid":
        o = jax.nn.sigmoid(o)                    # EUP
    # else: identity activation

    out_ref[...] = o.astype(out_ref.dtype)       # dense (Cout, M) store


# ------------------------------- wrapper ------------------------------------ #

def basic_block_2d(x_nchw, params, *, stride=1, padding=1,
                   use_batch_norm=True, activation="relu", eps=1e-5):
    """Forward pass of BasicBlock2D. Input/output are NCHW like PyTorch."""
    x = jnp.transpose(x_nchw, (0, 2, 3, 1)).astype(jnp.float32)   # NCHW -> NHWC
    N, H, W, Cin = x.shape

    w1_oihw = params["w1"]
    Cout, _, KH, KW = w1_oihw.shape

    def to_mat(w_oihw):
        # OIHW -> HWIO -> (KH*KW*Cin, Cout); flatten order (kh, kw, cin) matches
        # the im2col tap order in the kernel.
        w = jnp.transpose(w_oihw, (2, 3, 1, 0)).astype(jnp.float32)
        return w.reshape(KH * KW * Cin, Cout)

    w_cat = jnp.concatenate([to_mat(params["w1"]), to_mat(params["w2"])], axis=1)
    b_cat = jnp.concatenate([params["b1"], params["b2"]]).reshape(2 * Cout, 1).astype(jnp.float32)
    g_cat = jnp.concatenate([params["g1"], params["g2"]]).reshape(2 * Cout, 1).astype(jnp.float32)
    bt_cat = jnp.concatenate([params["bt1"], params["bt2"]]).reshape(2 * Cout, 1).astype(jnp.float32)

    # Zero-padding kept in the wrapper (cheap, robust); the kernel reads the
    # padded halo directly.
    x_pad = jnp.pad(x, ((0, 0), (padding, padding), (padding, padding), (0, 0)))
    Hout = (H + 2 * padding - KH) // stride + 1
    Wout = (W + 2 * padding - KW) // stride + 1
    M = N * Hout * Wout

    kernel = functools.partial(_basic_block_kernel, stride=stride, eps=eps,
                               use_bn=use_batch_norm, act=activation,
                               kh_size=KH, kw_size=KW, hout=Hout, wout=Wout)

    # Advisory cost estimate for XLA's scheduler around the custom call.
    flops = 2 * M * (KH * KW * Cin) * (2 * Cout) + 8 * M * Cout
    transcendentals = (2 * Cout) if use_batch_norm else 0
    if activation in ("tanh", "sigmoid"):
        transcendentals += M * Cout
    bytes_accessed = 4 * (x_pad.size + w_cat.size + 3 * 2 * Cout + Cout * M)
    cost = pl.CostEstimate(flops=flops, transcendentals=transcendentals,
                           bytes_accessed=bytes_accessed)

    vmem_spec = pl.BlockSpec(memory_space=pltpu.MemorySpace.VMEM)
    out = pl.pallas_call(
        kernel,
        out_shape=jax.ShapeDtypeStruct((Cout, M), jnp.float32),
        in_specs=[vmem_spec] * 5,
        out_specs=vmem_spec,
        cost_estimate=cost,
    )(x_pad, w_cat, b_cat, g_cat, bt_cat)

    # (Cout, N*Hout*Wout) -> NCHW
    return jnp.transpose(out.reshape(Cout, N, Hout, Wout), (1, 0, 2, 3))


# --------------------------- pure-JAX reference ------------------------------ #

def basic_block_2d_ref(x_nchw, params, *, stride=1, padding=1,
                       use_batch_norm=True, activation="relu", eps=1e-5):
    x = jnp.transpose(x_nchw, (0, 2, 3, 1)).astype(jnp.float32)

    def conv(w_oihw, b):
        w = jnp.transpose(w_oihw, (2, 3, 1, 0)).astype(jnp.float32)
        y = lax.conv_general_dilated(
            x, w, (stride, stride), [(padding, padding), (padding, padding)],
            dimension_numbers=("NHWC", "HWIO", "NHWC"))
        return y + b.reshape(1, 1, 1, -1)

    def bn(y, g, bt):
        if not use_batch_norm:
            return y
        mean = jnp.mean(y, axis=(0, 1, 2))
        var = jnp.var(y, axis=(0, 1, 2))
        return (y - mean) * lax.rsqrt(var + eps) * g + bt

    o = (bn(conv(params["w1"], params["b1"]), params["g1"], params["bt1"])
         + bn(conv(params["w2"], params["b2"]), params["g2"], params["bt2"]))
    if activation == "relu":
        o = jnp.maximum(o, 0.0)
    elif activation == "tanh":
        o = jnp.tanh(o)
    elif activation == "sigmoid":
        o = jax.nn.sigmoid(o)
    return jnp.transpose(o, (0, 3, 1, 2))


# --------------------------------- main -------------------------------------- #

if __name__ == "__main__":
    # Module config: in_channels=4, out_channels=8, kernel=3, stride=1,
    # padding=1, use_batch_norm=True, activation='relu'
    N, Cin, H, W = 2, 4, 16, 16
    Cout, K = 8, 3

    key = jax.random.PRNGKey(0)
    ks = jax.random.split(key, 9)
    params = {
        "w1": jax.random.normal(ks[0], (Cout, Cin, K, K), jnp.float32) * 0.1,
        "b1": jax.random.normal(ks[1], (Cout,), jnp.float32) * 0.1,
        "w2": jax.random.normal(ks[2], (Cout, Cin, K, K), jnp.float32) * 0.1,
        "b2": jax.random.normal(ks[3], (Cout,), jnp.float32) * 0.1,
        "g1": 1.0 + jax.random.normal(ks[4], (Cout,), jnp.float32) * 0.05,
        "bt1": jax.random.normal(ks[5], (Cout,), jnp.float32) * 0.05,
        "g2": 1.0 + jax.random.normal(ks[6], (Cout,), jnp.float32) * 0.05,
        "bt2": jax.random.normal(ks[7], (Cout,), jnp.float32) * 0.05,
    }
    x = jax.random.normal(ks[8], (N, Cin, H, W), jnp.float32)

    # Spec configuration: conv -> BN -> +downsample -> ReLU.
    out = basic_block_2d(x, params, stride=1, padding=1,
                         use_batch_norm=True, activation="relu")
    out = jax.block_until_ready(out)
    ref = basic_block_2d_ref(x, params, stride=1, padding=1,
                             use_batch_norm=True, activation="relu")
    assert out.shape == (N, Cout, H, W), out.shape
    assert jnp.allclose(out, ref, rtol=1e-4, atol=1e-4), (
        float(jnp.max(jnp.abs(out - ref))))

    # Extra coverage: no-BN (bias path) + tanh activation.
    out2 = basic_block_2d(x, params, stride=1, padding=1,
                          use_batch_norm=False, activation="tanh")
    out2 = jax.block_until_ready(out2)
    ref2 = basic_block_2d_ref(x, params, stride=1, padding=1,
                              use_batch_norm=False, activation="tanh")
    assert jnp.allclose(out2, ref2, rtol=1e-4, atol=1e-4), (
        float(jnp.max(jnp.abs(out2 - ref2))))

    print("KERNEL_OK")
</pallas_src>

<mosaic_0001>
module attributes {stable_mosaic.version = 11 : i64} {
  func.func @_basic_block_kernel(%arg0: memref<2x18x18x4xf32, #tpu.memory_space<vmem>>, %arg1: memref<36x16xf32, #tpu.memory_space<vmem>>, %arg2: memref<16x1xf32, #tpu.memory_space<vmem>>, %arg3: memref<16x1xf32, #tpu.memory_space<vmem>>, %arg4: memref<16x1xf32, #tpu.memory_space<vmem>>, %arg5: memref<8x512xf32, #tpu.memory_space<vmem>>) attributes {dimension_semantics = [], scalar_prefetch = 0 : i64, scratch_operands = 0 : i64, tpu.core_type = #tpu.core_type<tc>} {
    %c0 = arith.constant 0 : index
    %c0_0 = arith.constant 0 : index
    %c0_1 = arith.constant 0 : index
    %c0_2 = arith.constant 0 : index
    %0 = vector.load %arg0[%c0, %c0_0, %c0_1, %c0_2] : memref<2x18x18x4xf32, #tpu.memory_space<vmem>>, vector<2x18x18x4xf32>
    %1 = vector.extract_strided_slice %0 {offsets = [0, 0, 0, 0], sizes = [2, 16, 16, 4], strides = [1, 1, 1, 1]} : vector<2x18x18x4xf32> to vector<2x16x16x4xf32>
    %2 = vector.shape_cast %1 : vector<2x16x16x4xf32> to vector<512x4xf32>
    %3 = vector.extract_strided_slice %0 {offsets = [0, 0, 1, 0], sizes = [2, 16, 16, 4], strides = [1, 1, 1, 1]} : vector<2x18x18x4xf32> to vector<2x16x16x4xf32>
    %4 = vector.shape_cast %3 : vector<2x16x16x4xf32> to vector<512x4xf32>
    %5 = vector.extract_strided_slice %0 {offsets = [0, 0, 2, 0], sizes = [2, 16, 16, 4], strides = [1, 1, 1, 1]} : vector<2x18x18x4xf32> to vector<2x16x16x4xf32>
    %6 = vector.shape_cast %5 : vector<2x16x16x4xf32> to vector<512x4xf32>
    %7 = vector.extract_strided_slice %0 {offsets = [0, 1, 0, 0], sizes = [2, 16, 16, 4], strides = [1, 1, 1, 1]} : vector<2x18x18x4xf32> to vector<2x16x16x4xf32>
    %8 = vector.shape_cast %7 : vector<2x16x16x4xf32> to vector<512x4xf32>
    %9 = vector.extract_strided_slice %0 {offsets = [0, 1, 1, 0], sizes = [2, 16, 16, 4], strides = [1, 1, 1, 1]} : vector<2x18x18x4xf32> to vector<2x16x16x4xf32>
    %10 = vector.shape_cast %9 : vector<2x16x16x4xf32> to vector<512x4xf32>
    %11 = vector.extract_strided_slice %0 {offsets = [0, 1, 2, 0], sizes = [2, 16, 16, 4], strides = [1, 1, 1, 1]} : vector<2x18x18x4xf32> to vector<2x16x16x4xf32>
    %12 = vector.shape_cast %11 : vector<2x16x16x4xf32> to vector<512x4xf32>
    %13 = vector.extract_strided_slice %0 {offsets = [0, 2, 0, 0], sizes = [2, 16, 16, 4], strides = [1, 1, 1, 1]} : vector<2x18x18x4xf32> to vector<2x16x16x4xf32>
    %14 = vector.shape_cast %13 : vector<2x16x16x4xf32> to vector<512x4xf32>
    %15 = vector.extract_strided_slice %0 {offsets = [0, 2, 1, 0], sizes = [2, 16, 16, 4], strides = [1, 1, 1, 1]} : vector<2x18x18x4xf32> to vector<2x16x16x4xf32>
    %16 = vector.shape_cast %15 : vector<2x16x16x4xf32> to vector<512x4xf32>
    %17 = vector.extract_strided_slice %0 {offsets = [0, 2, 2, 0], sizes = [2, 16, 16, 4], strides = [1, 1, 1, 1]} : vector<2x18x18x4xf32> to vector<2x16x16x4xf32>
    %18 = vector.shape_cast %17 : vector<2x16x16x4xf32> to vector<512x4xf32>
    %19 = tpu.concatenate %2, %4, %6, %8, %10, %12, %14, %16, %18 in 1 : vector<512x4xf32>, vector<512x4xf32>, vector<512x4xf32>, vector<512x4xf32>, vector<512x4xf32>, vector<512x4xf32>, vector<512x4xf32>, vector<512x4xf32>, vector<512x4xf32> -> vector<512x36xf32>
    %c0_3 = arith.constant 0 : index
    %c0_4 = arith.constant 0 : index
    %20 = vector.load %arg1[%c0_3, %c0_4] : memref<36x16xf32, #tpu.memory_space<vmem>>, vector<36x16xf32>
    %cst = arith.constant dense<0.000000e+00> : vector<512x16xf32>
    %21 = tpu.matmul %19, %20, %cst {dimension_numbers = #tpu.dot_dimension_numbers<[1], [0], [0], [1], [0, 0, 1, 1], [], []>} : vector<512x36xf32>, vector<36x16xf32>, vector<512x16xf32> -> vector<512x16xf32>
    %22 = tpu.transpose %21, [1, 0] : vector<512x16xf32> -> vector<16x512xf32>
    %cst_5 = arith.constant dense<0.000000e+00> : vector<16xf32>
    %23 = vector.multi_reduction <add>, %22, %cst_5 [1] : vector<16x512xf32> to vector<16xf32>
    %24 = vector.shape_cast %23 : vector<16xf32> to vector<16x1xf32>
    %cst_6 = arith.constant 0.001953125 : f32
    %25 = vector.broadcast %cst_6 : f32 to vector<16x1xf32>
    %26 = arith.mulf %24, %25 : vector<16x1xf32>
    %27 = arith.mulf %22, %22 : vector<16x512xf32>
    %cst_7 = arith.constant dense<0.000000e+00> : vector<16xf32>
    %28 = vector.multi_reduction <add>, %27, %cst_7 [1] : vector<16x512xf32> to vector<16xf32>
    %29 = vector.shape_cast %28 : vector<16xf32> to vector<16x1xf32>
    %cst_8 = arith.constant 0.001953125 : f32
    %30 = vector.broadcast %cst_8 : f32 to vector<16x1xf32>
    %31 = arith.mulf %29, %30 : vector<16x1xf32>
    %32 = arith.mulf %26, %26 : vector<16x1xf32>
    %33 = arith.subf %31, %32 : vector<16x1xf32>
    %c0_9 = arith.constant 0 : index
    %c0_10 = arith.constant 0 : index
    %34 = vector.load %arg3[%c0_9, %c0_10] : memref<16x1xf32, #tpu.memory_space<vmem>>, vector<16x1xf32>
    %cst_11 = arith.constant 9.99999974E-6 : f32
    %35 = vector.broadcast %cst_11 : f32 to vector<16x1xf32>
    %36 = arith.addf %33, %35 : vector<16x1xf32>
    %37 = math.rsqrt %36 : vector<16x1xf32>
    %38 = arith.mulf %34, %37 : vector<16x1xf32>
    %c0_12 = arith.constant 0 : index
    %c0_13 = arith.constant 0 : index
    %39 = vector.load %arg4[%c0_12, %c0_13] : memref<16x1xf32, #tpu.memory_space<vmem>>, vector<16x1xf32>
    %40 = arith.mulf %26, %38 : vector<16x1xf32>
    %41 = arith.subf %39, %40 : vector<16x1xf32>
    %42 = vector.broadcast %38 : vector<16x1xf32> to vector<16x512xf32>
    %43 = arith.mulf %22, %42 : vector<16x512xf32>
    %44 = vector.broadcast %41 : vector<16x1xf32> to vector<16x512xf32>
    %45 = arith.addf %43, %44 : vector<16x512xf32>
    %46 = vector.extract_strided_slice %45 {offsets = [0, 0], sizes = [8, 512], strides = [1, 1]} : vector<16x512xf32> to vector<8x512xf32>
    %47 = vector.extract_strided_slice %45 {offsets = [8, 0], sizes = [8, 512], strides = [1, 1]} : vector<16x512xf32> to vector<8x512xf32>
    %48 = arith.addf %46, %47 : vector<8x512xf32>
    %cst_14 = arith.constant 0.000000e+00 : f32
    %49 = vector.broadcast %cst_14 : f32 to vector<8x512xf32>
    %50 = arith.maximumf %48, %49 : vector<8x512xf32>
    %c0_15 = arith.constant 0 : index
    %c0_16 = arith.constant 0 : index
    %51 = vector.load %arg5[%c0_15, %c0_16] : memref<8x512xf32, #tpu.memory_space<vmem>>, vector<8x512xf32>
    tpu.vector_store %arg5[%c0_15, %c0_16], %50 {strides = array<i32>} : memref<8x512xf32, #tpu.memory_space<vmem>>, vector<8x512xf32>,
    return
  }
}

</mosaic_0001>

<llo_original>
// kernel: tpu_custom_call.1
$region0: #{tpu_custom_call.1}
  #allocation0 [shape = 'u32[]', space=smem, size = 0x4, offset = 0x4, fixed_abs, tag = 'smem constant byte address 0x4 - core index']
  #allocation1 [shape = 'u32[72,128]{1,0:T(1,128)}', space=vmem, size = 0x9000, scoped, tag = 'internal scratch']
  %s0 = inlined_call_operand.vmem [shape: f32[2,18,18,4], index: 0, kind: input, shape index: {}]
  %s1 = inlined_call_operand.vmem [shape: f32[36,16], index: 1, kind: input, shape index: {}]
  %s2 = inlined_call_operand.vmem [shape: f32[16,1], index: 2, kind: input, shape index: {}]
  %s3 = inlined_call_operand.vmem [shape: f32[16,1], index: 3, kind: input, shape index: {}]
  %s4 = inlined_call_operand.vmem [shape: f32[16,1], index: 4, kind: input, shape index: {}]
  %s5 = inlined_call_operand.hbm [shape: f32[8,512], index: 5, kind: output, shape index: {}]
  %s6 = sld [smem:[#allocation0]]
  $region30: #{tpu_custom_call.1} parent=0
    _
  %s8 = ssub.s32 1, %s6
  %s9 = scalar_select 0, %s8, %s6
  $region1: #{tpu_custom_call.1} parent=0
    #allocation2 [shape = 'u8[16384]{0}', space=vmem, size = 0x4000, scoped, tag = 'output window, operand 0, single buffered']
    #allocation3 [shape = 's32[1]{0}', space=sflag, size = 0x4, scoped, tag = 'scoped memory for tpu_custom_call.1']
    %10 = vsyncpa [#allocation3], 0
    // Predicated region
    $region2: #{tpu_custom_call.1} parent=1 // pred_check
      _
    $region3: #{tpu_custom_call.1} parent=1 // pred_check_branch
      %12 = sbr.rel (0) target = $region5
    $region4: #{tpu_custom_call.1} parent=1 // pred_region
      _
    $region5: #{tpu_custom_call.1} parent=1 // pred_fallthru
      _
    // Predicated region
    $region6: #{tpu_custom_call.1} parent=1 // pred_check
      _
    $region7: #{tpu_custom_call.1} parent=1 // pred_check_branch
      %14 = sbr.rel (0) target = $region9
    $region8: #{tpu_custom_call.1} parent=1 // pred_region
      _
    $region9: #{tpu_custom_call.1} parent=1 // pred_fallthru
      _
    // Predicated region
    $region10: #{tpu_custom_call.1} parent=1 // pred_check
      _
    $region11: #{tpu_custom_call.1} parent=1 // pred_check_branch
      %16 = sbr.rel (0) target = $region13
    $region12: #{tpu_custom_call.1} parent=1 // pred_region
      _
    $region13: #{tpu_custom_call.1} parent=1 // pred_fallthru
      _
    // Predicated region
    $region14: #{tpu_custom_call.1} parent=1 // pred_check
      _
    $region15: #{tpu_custom_call.1} parent=1 // pred_check_branch
      %18 = sbr.rel (0) target = $region17
    $region16: #{tpu_custom_call.1} parent=1 // pred_region
      _
    $region17: #{tpu_custom_call.1} parent=1 // pred_fallthru
      _
    // Predicated region
    $region18: #{tpu_custom_call.1} parent=1 // pred_check
      _
    $region19: #{tpu_custom_call.1} parent=1 // pred_check_branch
      %20 = sbr.rel (0) target = $region21
    $region20: #{tpu_custom_call.1} parent=1 // pred_region
      _
    $region21: #{tpu_custom_call.1} parent=1 // pred_fallthru
      _
    %v21 = vld [vmem:[%s0] sm:$0xff]
    %v22 = vld [vmem:[%s0 + $0x8] sm:$0xff]
    %v23 = vld [vmem:[%s0 + $0x10] sm:$0x3]
    %v24 = vld [vmem:[%s0 + $0x18] sm:$0xff]
    %v25 = vld [vmem:[%s0 + $0x20] sm:$0xff]
    %v26 = vld [vmem:[%s0 + $0x28] sm:$0x3]
    %v27 = vld [vmem:[%s0 + $0x30] sm:$0xff]
    %v28 = vld [vmem:[%s0 + $0x38] sm:$0xff]
    %v29 = vld [vmem:[%s0 + $0x40] sm:$0x3]
    %v30 = vld [vmem:[%s0 + $0x48] sm:$0xff]
    %v31 = vld [vmem:[%s0 + $0x50] sm:$0xff]
    %v32 = vld [vmem:[%s0 + $0x58] sm:$0x3]
    %v33 = vld [vmem:[%s0 + $0x60] sm:$0xff]
    %v34 = vld [vmem:[%s0 + $0x68] sm:$0xff]
    %v35 = vld [vmem:[%s0 + $0x70] sm:$0x3]
    %v36 = vld [vmem:[%s0 + $0x78] sm:$0xff]
    %v37 = vld [vmem:[%s0 + $0x80] sm:$0xff]
    %v38 = vld [vmem:[%s0 + $0x88] sm:$0x3]
    %v39 = vld [vmem:[%s0 + $0x90] sm:$0xff]
    %v40 = vld [vmem:[%s0 + $0x98] sm:$0xff]
    %v41 = vld [vmem:[%s0 + $0xa0] sm:$0x3]
    %v42 = vld [vmem:[%s0 + $0xa8] sm:$0xff]
    %v43 = vld [vmem:[%s0 + $0xb0] sm:$0xff]
    %v44 = vld [vmem:[%s0 + $0xb8] sm:$0x3]
    %v45 = vld [vmem:[%s0 + $0xc0] sm:$0xff]
    %v46 = vld [vmem:[%s0 + $0xc8] sm:$0xff]
    %v47 = vld [vmem:[%s0 + $0xd0] sm:$0x3]
    %v48 = vld [vmem:[%s0 + $0xd8] sm:$0xff]
    %v49 = vld [vmem:[%s0 + $0xe0] sm:$0xff]
    %v50 = vld [vmem:[%s0 + $0xe8] sm:$0x3]
    %v51 = vld [vmem:[%s0 + $0xf0] sm:$0xff]
    %v52 = vld [vmem:[%s0 + $0xf8] sm:$0xff]
    %v53 = vld [vmem:[%s0 + $0x100] sm:$0x3]
    %v54 = vld [vmem:[%s0 + $0x108] sm:$0xff]
    %v55 = vld [vmem:[%s0 + $0x110] sm:$0xff]
    %v56 = vld [vmem:[%s0 + $0x118] sm:$0x3]
    %v57 = vld [vmem:[%s0 + $0x120] sm:$0xff]
    %v58 = vld [vmem:[%s0 + $0x128] sm:$0xff]
    %v59 = vld [vmem:[%s0 + $0x130] sm:$0x3]
    %v60 = vld [vmem:[%s0 + $0x138] sm:$0xff]
    %v61 = vld [vmem:[%s0 + $0x140] sm:$0xff]
    %v62 = vld [vmem:[%s0 + $0x148] sm:$0x3]
    %v63 = vld [vmem:[%s0 + $0x150] sm:$0xff]
    %v64 = vld [vmem:[%s0 + $0x158] sm:$0xff]
    %v65 = vld [vmem:[%s0 + $0x160] sm:$0x3]
    %v66 = vld [vmem:[%s0 + $0x168] sm:$0xff]
    %v67 = vld [vmem:[%s0 + $0x170] sm:$0xff]
    %v68 = vld [vmem:[%s0 + $0x178] sm:$0x3]
    %v69 = vld [vmem:[%s0 + $0x180] sm:$0xff]
    %v70 = vld [vmem:[%s0 + $0x188] sm:$0xff]
    %v71 = vld [vmem:[%s0 + $0x190] sm:$0x3]
    %v72 = vld [vmem:[%s0 + $0x198] sm:$0xff]
    %v73 = vld [vmem:[%s0 + $0x1a0] sm:$0xff]
    %v74 = vld [vmem:[%s0 + $0x1a8] sm:$0x3]
    %v75 = vld [vmem:[%s0 + $0x1b0] sm:$0xff]
    %v76 = vld [vmem:[%s0 + $0x1b8] sm:$0xff]
    %v77 = vld [vmem:[%s0 + $0x1c0] sm:$0x3]
    %v78 = vld [vmem:[%s0 + $0x1c8] sm:$0xff]
    %v79 = vld [vmem:[%s0 + $0x1d0] sm:$0xff]
    %v80 = vld [vmem:[%s0 + $0x1d8] sm:$0x3]
    %v81 = vld [vmem:[%s0 + $0x1e0] sm:$0xff]
    %v82 = vld [vmem:[%s0 + $0x1e8] sm:$0xff]
    %v83 = vld [vmem:[%s0 + $0x1f0] sm:$0x3]
    %v84 = vld [vmem:[%s0 + $0x1f8] sm:$0xff]
    %v85 = vld [vmem:[%s0 + $0x200] sm:$0xff]
    %v86 = vld [vmem:[%s0 + $0x208] sm:$0x3]
    %v87 = vld [vmem:[%s0 + $0x210] sm:$0xff]
    %v88 = vld [vmem:[%s0 + $0x218] sm:$0xff]
    %v89 = vld [vmem:[%s0 + $0x220] sm:$0x3]
    %v90 = vld [vmem:[%s0 + $0x228] sm:$0xff]
    %v91 = vld [vmem:[%s0 + $0x230] sm:$0xff]
    %v92 = vld [vmem:[%s0 + $0x238] sm:$0x3]
    %v93 = vld [vmem:[%s0 + $0x240] sm:$0xff]
    %v94 = vld [vmem:[%s0 + $0x248] sm:$0xff]
    %v95 = vld [vmem:[%s0 + $0x250] sm:$0x3]
    %v96 = vld [vmem:[%s0 + $0x258] sm:$0xff]
    %v97 = vld [vmem:[%s0 + $0x260] sm:$0xff]
    %v98 = vld [vmem:[%s0 + $0x268] sm:$0x3]
    %v99 = vld [vmem:[%s0 + $0x270] sm:$0xff]
    %v100 = vld [vmem:[%s0 + $0x278] sm:$0xff]
    %v101 = vld [vmem:[%s0 + $0x280] sm:$0x3]
    %v102 = vld [vmem:[%s0 + $0x288] sm:$0xff]
    %v103 = vld [vmem:[%s0 + $0x290] sm:$0xff]
    %v104 = vld [vmem:[%s0 + $0x298] sm:$0x3]
    %v105 = vld [vmem:[%s0 + $0x2a0] sm:$0xff]
    %v106 = vld [vmem:[%s0 + $0x2a8] sm:$0xff]
    %v107 = vld [vmem:[%s0 + $0x2b0] sm:$0x3]
    %v108 = vld [vmem:[%s0 + $0x2b8] sm:$0xff]
    %v109 = vld [vmem:[%s0 + $0x2c0] sm:$0xff]
    %v110 = vld [vmem:[%s0 + $0x2c8] sm:$0x3]
    %v111 = vld [vmem:[%s0 + $0x2d0] sm:$0xff]
    %v112 = vld [vmem:[%s0 + $0x2d8] sm:$0xff]
    %v113 = vld [vmem:[%s0 + $0x2e0] sm:$0x3]
    %v114 = vld [vmem:[%s0 + $0x2e8] sm:$0xff]
    %v115 = vld [vmem:[%s0 + $0x2f0] sm:$0xff]
    %v116 = vld [vmem:[%s0 + $0x2f8] sm:$0x3]
    %v117 = vld [vmem:[%s0 + $0x300] sm:$0xff]
    %v118 = vld [vmem:[%s0 + $0x308] sm:$0xff]
    %v119 = vld [vmem:[%s0 + $0x310] sm:$0x3]
    %v120 = vld [vmem:[%s0 + $0x318] sm:$0xff]
    %v121 = vld [vmem:[%s0 + $0x320] sm:$0xff]
    %v122 = vld [vmem:[%s0 + $0x328] sm:$0x3]
    %v123 = vld [vmem:[%s0 + $0x330] sm:$0xff]
    %v124 = vld [vmem:[%s0 + $0x338] sm:$0xff]
    %v125 = vld [vmem:[%s0 + $0x340] sm:$0x3]
    %v126 = vld [vmem:[%s0 + $0x348] sm:$0xff]
    %v127 = vld [vmem:[%s0 + $0x350] sm:$0xff]
    %v128 = vld [vmem:[%s0 + $0x358] sm:$0x3]
    %vm225 = vcmask 1046528
    %v226 = vrot.slane %v21, 1
    %v227 = vrot.slane %v22, 1
    %v228 = vsel %vm225, %v226, %v227
    %v229 = vrot.slane %v23, 1
    %v230 = vsel %vm225, %v227, %v229
    %v231 = vrot.slane %v24, 1
    %v232 = vrot.slane %v25, 1
    %v233 = vsel %vm225, %v231, %v232
    %v234 = vrot.slane %v26, 1
    %v235 = vsel %vm225, %v232, %v234
    %v236 = vrot.slane %v27, 1
    %v237 = vrot.slane %v28, 1
    %v238 = vsel %vm225, %v236, %v237
    %v239 = vrot.slane %v29, 1
    %v240 = vsel %vm225, %v237, %v239
    %v241 = vrot.slane %v30, 1
    %v242 = vrot.slane %v31, 1
    %v243 = vsel %vm225, %v241, %v242
    %v244 = vrot.slane %v32, 1
    %v245 = vsel %vm225, %v242, %v244
    %v246 = vrot.slane %v33, 1
    %v247 = vrot.slane %v34, 1
    %v248 = vsel %vm225, %v246, %v247
    %v249 = vrot.slane %v35, 1
    %v250 = vsel %vm225, %v247, %v249
    %v251 = vrot.slane %v36, 1
    %v252 = vrot.slane %v37, 1
    %v253 = vsel %vm225, %v251, %v252
    %v254 = vrot.slane %v38, 1
    %v255 = vsel %vm225, %v252, %v254
    %v256 = vrot.slane %v39, 1
    %v257 = vrot.slane %v40, 1
    %v258 = vsel %vm225, %v256, %v257
    %v259 = vrot.slane %v41, 1
    %v260 = vsel %vm225, %v257, %v259
    %v261 = vrot.slane %v42, 1
    %v262 = vrot.slane %v43, 1
    %v263 = vsel %vm225, %v261, %v262
    %v264 = vrot.slane %v44, 1
    %v265 = vsel %vm225, %v262, %v264
    %v266 = vrot.slane %v45, 1
    %v267 = vrot.slane %v46, 1
    %v268 = vsel %vm225, %v266, %v267
    %v269 = vrot.slane %v47, 1
    %v270 = vsel %vm225, %v267, %v269
    %v271 = vrot.slane %v48, 1
    %v272 = vrot.slane %v49, 1
    %v273 = vsel %vm225, %v271, %v272
    %v274 = vrot.slane %v50, 1
    %v275 = vsel %vm225, %v272, %v274
    %v276 = vrot.slane %v51, 1
    %v277 = vrot.slane %v52, 1
    %v278 = vsel %vm225, %v276, %v277
    %v279 = vrot.slane %v53, 1
    %v280 = vsel %vm225, %v277, %v279
    %v281 = vrot.slane %v54, 1
    %v282 = vrot.slane %v55, 1
    %v283 = vsel %vm225, %v281, %v282
    %v284 = vrot.slane %v56, 1
    %v285 = vsel %vm225, %v282, %v284
    %v286 = vrot.slane %v57, 1
    %v287 = vrot.slane %v58, 1
    %v288 = vsel %vm225, %v286, %v287
    %v289 = vrot.slane %v59, 1
    %v290 = vsel %vm225, %v287, %v289
    %v291 = vrot.slane %v60, 1
    %v292 = vrot.slane %v61, 1
    %v293 = vsel %vm225, %v291, %v292
    %v294 = vrot.slane %v62, 1
    %v295 = vsel %vm225, %v292, %v294
    %v296 = vrot.slane %v63, 1
    %v297 = vrot.slane %v64, 1
    %v298 = vsel %vm225, %v296, %v297
    %v299 = vrot.slane %v65, 1
    %v300 = vsel %vm225, %v297, %v299
    %v301 = vrot.slane %v66, 1
    %v302 = vrot.slane %v67, 1
    %v303 = vsel %vm225, %v301, %v302
    %v304 = vrot.slane %v68, 1
    %v305 = vsel %vm225, %v302, %v304
    %v306 = vrot.slane %v75, 1
    %v307 = vrot.slane %v76, 1
    %v308 = vsel %vm225, %v306, %v307
    %v309 = vrot.slane %v77, 1
    %v310 = vsel %vm225, %v307, %v309
    %v311 = vrot.slane %v78, 1
    %v312 = vrot.slane %v79, 1
    %v313 = vsel %vm225, %v311, %v312
    %v314 = vrot.slane %v80, 1
    %v315 = vsel %vm225, %v312, %v314
    %v316 = vrot.slane %v81, 1
    %v317 = vrot.slane %v82, 1
    %v318 = vsel %vm225, %v316, %v317
    %v319 = vrot.slane %v83, 1
    %v320 = vsel %vm225, %v317, %v319
    %v321 = vrot.slane %v84, 1
    %v322 = vrot.slane %v85, 1
    %v323 = vsel %vm225, %v321, %v322
    %v324 = vrot.slane %v86, 1
    %v325 = vsel %vm225, %v322, %v324
    %v326 = vrot.slane %v87, 1
    %v327 = vrot.slane %v88, 1
    %v328 = vsel %vm225, %v326, %v327
    %v329 = vrot.slane %v89, 1
    %v330 = vsel %vm225, %v327, %v329
    %v331 = vrot.slane %v90, 1
    %v332 = vrot.slane %v91, 1
    %v333 = vsel %vm225, %v331, %v332
    %v334 = vrot.slane %v92, 1
    %v335 = vsel %vm225, %v332, %v334
    %v336 = vrot.slane %v93, 1
    %v337 = vrot.slane %v94, 1
    %v338 = vsel %vm225, %v336, %v337
    %v339 = vrot.slane %v95, 1
    %v340 = vsel %vm225, %v337, %v339
    %v341 = vrot.slane %v96, 1
    %v342 = vrot.slane %v97, 1
    %v343 = vsel %vm225, %v341, %v342
    %v344 = vrot.slane %v98, 1
    %v345 = vsel %vm225, %v342, %v344
    %v346 = vrot.slane %v99, 1
    %v347 = vrot.slane %v100, 1
    %v348 = vsel %vm225, %v346, %v347
    %v349 = vrot.slane %v101, 1
    %v350 = vsel %vm225, %v347, %v349
    %v351 = vrot.slane %v102, 1
    %v352 = vrot.slane %v103, 1
    %v353 = vsel %vm225, %v351, %v352
    %v354 = vrot.slane %v104, 1
    %v355 = vsel %vm225, %v352, %v354
    %v356 = vrot.slane %v105, 1
    %v357 = vrot.slane %v106, 1
    %v358 = vsel %vm225, %v356, %v357
    %v359 = vrot.slane %v107, 1
    %v360 = vsel %vm225, %v357, %v359
    %v361 = vrot.slane %v108, 1
    %v362 = vrot.slane %v109, 1
    %v363 = vsel %vm225, %v361, %v362
    %v364 = vrot.slane %v110, 1
    %v365 = vsel %vm225, %v362, %v364
    %v366 = vrot.slane %v111, 1
    %v367 = vrot.slane %v112, 1
    %v368 = vsel %vm225, %v366, %v367
    %v369 = vrot.slane %v113, 1
    %v370 = vsel %vm225, %v367, %v369
    %v371 = vrot.slane %v114, 1
    %v372 = vrot.slane %v115, 1
    %v373 = vsel %vm225, %v371, %v372
    %v374 = vrot.slane %v116, 1
    %v375 = vsel %vm225, %v372, %v374
    %v376 = vrot.slane %v117, 1
    %v377 = vrot.slane %v118, 1
    %v378 = vsel %vm225, %v376, %v377
    %v379 = vrot.slane %v119, 1
    %v380 = vsel %vm225, %v377, %v379
    %v381 = vrot.slane %v120, 1
    %v382 = vrot.slane %v121, 1
    %v383 = vsel %vm225, %v381, %v382
    %v384 = vrot.slane %v122, 1
    %v385 = vsel %vm225, %v382, %v384
    %vm386 = vcmask 1045504
    %v387 = vrot.slane %v21, 2
    %v388 = vrot.slane %v22, 2
    %v389 = vsel %vm386, %v387, %v388
    %v390 = vrot.slane %v23, 2
    %v391 = vsel %vm386, %v388, %v390
    %v392 = vrot.slane %v24, 2
    %v393 = vrot.slane %v25, 2
    %v394 = vsel %vm386, %v392, %v393
    %v395 = vrot.slane %v26, 2
    %v396 = vsel %vm386, %v393, %v395
    %v397 = vrot.slane %v27, 2
    %v398 = vrot.slane %v28, 2
    %v399 = vsel %vm386, %v397, %v398
    %v400 = vrot.slane %v29, 2
    %v401 = vsel %vm386, %v398, %v400
    %v402 = vrot.slane %v30, 2
    %v403 = vrot.slane %v31, 2
    %v404 = vsel %vm386, %v402, %v403
    %v405 = vrot.slane %v32, 2
    %v406 = vsel %vm386, %v403, %v405
    %v407 = vrot.slane %v33, 2
    %v408 = vrot.slane %v34, 2
    %v409 = vsel %vm386, %v407, %v408
    %v410 = vrot.slane %v35, 2
    %v411 = vsel %vm386, %v408, %v410
    %v412 = vrot.slane %v36, 2
    %v413 = vrot.slane %v37, 2
    %v414 = vsel %vm386, %v412, %v413
    %v415 = vrot.slane %v38, 2
    %v416 = vsel %vm386, %v413, %v415
    %v417 = vrot.slane %v39, 2
    %v418 = vrot.slane %v40, 2
    %v419 = vsel %vm386, %v417, %v418
    %v420 = vrot.slane %v41, 2
    %v421 = vsel %vm386, %v418, %v420
    %v422 = vrot.slane %v42, 2
    %v423 = vrot.slane %v43, 2
    %v424 = vsel %vm386, %v422, %v423
    %v425 = vrot.slane %v44, 2
    %v426 = vsel %vm386, %v423, %v425
    %v427 = vrot.slane %v45, 2
    %v428 = vrot.slane %v46, 2
    %v429 = vsel %vm386, %v427, %v428
    %v430 = vrot.slane %v47, 2
    %v431 = vsel %vm386, %v428, %v430
    %v432 = vrot.slane %v48, 2
    %v433 = vrot.slane %v49, 2
    %v434 = vsel %vm386, %v432, %v433
    %v435 = vrot.slane %v50, 2
    %v436 = vsel %vm386, %v433, %v435
    %v437 = vrot.slane %v51, 2
    %v438 = vrot.slane %v52, 2
    %v439 = vsel %vm386, %v437, %v438
    %v440 = vrot.slane %v53, 2
    %v441 = vsel %vm386, %v438, %v440
    %v442 = vrot.slane %v54, 2
    %v443 = vrot.slane %v55, 2
    %v444 = vsel %vm386, %v442, %v443
    %v445 = vrot.slane %v56, 2
    %v446 = vsel %vm386, %v443, %v445
    %v447 = vrot.slane %v57, 2
    %v448 = vrot.slane %v58, 2
    %v449 = vsel %vm386, %v447, %v448
    %v450 = vrot.slane %v59, 2
    %v451 = vsel %vm386, %v448, %v450
    %v452 = vrot.slane %v60, 2
    %v453 = vrot.slane %v61, 2
    %v454 = vsel %vm386, %v452, %v453
    %v455 = vrot.slane %v62, 2
    %v456 = vsel %vm386, %v453, %v455
    %v457 = vrot.slane %v63, 2
    %v458 = vrot.slane %v64, 2
    %v459 = vsel %vm386, %v457, %v458
    %v460 = vrot.slane %v65, 2
    %v461 = vsel %vm386, %v458, %v460
    %v462 = vrot.slane %v66, 2
    %v463 = vrot.slane %v67, 2
    %v464 = vsel %vm386, %v462, %v463
    %v465 = vrot.slane %v68, 2
    %v466 = vsel %vm386, %v463, %v465
    %v467 = vrot.slane %v75, 2
    %v468 = vrot.slane %v76, 2
    %v469 = vsel %vm386, %v467, %v468
    %v470 = vrot.slane %v77, 2
    %v471 = vsel %vm386, %v468, %v470
    %v472 = vrot.slane %v78, 2
    %v473 = vrot.slane %v79, 2
    %v474 = vsel %vm386, %v472, %v473
    %v475 = vrot.slane %v80, 2
    %v476 = vsel %vm386, %v473, %v475
    %v477 = vrot.slane %v81, 2
    %v478 = vrot.slane %v82, 2
    %v479 = vsel %vm386, %v477, %v478
    %v480 = vrot.slane %v83, 2
    %v481 = vsel %vm386, %v478, %v480
    %v482 = vrot.slane %v84, 2
    %v483 = vrot.slane %v85, 2
    %v484 = vsel %vm386, %v482, %v483
    %v485 = vrot.slane %v86, 2
    %v486 = vsel %vm386, %v483, %v485
    %v487 = vrot.slane %v87, 2
    %v488 = vrot.slane %v88, 2
    %v489 = vsel %vm386, %v487, %v488
    %v490 = vrot.slane %v89, 2
    %v491 = vsel %vm386, %v488, %v490
    %v492 = vrot.slane %v90, 2
    %v493 = vrot.slane %v91, 2
    %v494 = vsel %vm386, %v492, %v493
    %v495 = vrot.slane %v92, 2
    %v496 = vsel %vm386, %v493, %v495
    %v497 = vrot.slane %v93, 2
    %v498 = vrot.slane %v94, 2
    %v499 = vsel %vm386, %v497, %v498
    %v500 = vrot.slane %v95, 2
    %v501 = vsel %vm386, %v498, %v500
    %v502 = vrot.slane %v96, 2
    %v503 = vrot.slane %v97, 2
    %v504 = vsel %vm386, %v502, %v503
    %v505 = vrot.slane %v98, 2
    %v506 = vsel %vm386, %v503, %v505
    %v507 = vrot.slane %v99, 2
    %v508 = vrot.slane %v100, 2
    %v509 = vsel %vm386, %v507, %v508
    %v510 = vrot.slane %v101, 2
    %v511 = vsel %vm386, %v508, %v510
    %v512 = vrot.slane %v102, 2
    %v513 = vrot.slane %v103, 2
    %v514 = vsel %vm386, %v512, %v513
    %v515 = vrot.slane %v104, 2
    %v516 = vsel %vm386, %v513, %v515
    %v517 = vrot.slane %v105, 2
    %v518 = vrot.slane %v106, 2
    %v519 = vsel %vm386, %v517, %v518
    %v520 = vrot.slane %v107, 2
    %v521 = vsel %vm386, %v518, %v520
    %v522 = vrot.slane %v108, 2
    %v523 = vrot.slane %v109, 2
    %v524 = vsel %vm386, %v522, %v523
    %v525 = vrot.slane %v110, 2
    %v526 = vsel %vm386, %v523, %v525
    %v527 = vrot.slane %v111, 2
    %v528 = vrot.slane %v112, 2
    %v529 = vsel %vm386, %v527, %v528
    %v530 = vrot.slane %v113, 2
    %v531 = vsel %vm386, %v528, %v530
    %v532 = vrot.slane %v114, 2
    %v533 = vrot.slane %v115, 2
    %v534 = vsel %vm386, %v532, %v533
    %v535 = vrot.slane %v116, 2
    %v536 = vsel %vm386, %v533, %v535
    %v537 = vrot.slane %v117, 2
    %v538 = vrot.slane %v118, 2
    %v539 = vsel %vm386, %v537, %v538
    %v540 = vrot.slane %v119, 2
    %v541 = vsel %vm386, %v538, %v540
    %v542 = vrot.slane %v120, 2
    %v543 = vrot.slane %v121, 2
    %v544 = vsel %vm386, %v542, %v543
    %v545 = vrot.slane %v122, 2
    %v546 = vsel %vm386, %v543, %v545
    %v553 = vrot.slane %v69, 1
    %v554 = vrot.slane %v70, 1
    %v555 = vsel %vm225, %v553, %v554
    %v556 = vrot.slane %v71, 1
    %v557 = vsel %vm225, %v554, %v556
    %v558 = vrot.slane %v123, 1
    %v559 = vrot.slane %v124, 1
    %v560 = vsel %vm225, %v558, %v559
    %v561 = vrot.slane %v125, 1
    %v562 = vsel %vm225, %v559, %v561
    %v563 = vrot.slane %v69, 2
    %v564 = vrot.slane %v70, 2
    %v565 = vsel %vm386, %v563, %v564
    %v566 = vrot.slane %v71, 2
    %v567 = vsel %vm386, %v564, %v566
    %v568 = vrot.slane %v123, 2
    %v569 = vrot.slane %v124, 2
    %v570 = vsel %vm386, %v568, %v569
    %v571 = vrot.slane %v125, 2
    %v572 = vsel %vm386, %v569, %v571
    %v579 = vrot.slane %v72, 1
    %v580 = vrot.slane %v73, 1
    %v581 = vsel %vm225, %v579, %v580
    %v582 = vrot.slane %v74, 1
    %v583 = vsel %vm225, %v580, %v582
    %v584 = vrot.slane %v126, 1
    %v585 = vrot.slane %v127, 1
    %v586 = vsel %vm225, %v584, %v585
    %v587 = vrot.slane %v128, 1
    %v588 = vsel %vm225, %v585, %v587
    %v589 = vrot.slane %v72, 2
    %v590 = vrot.slane %v73, 2
    %v591 = vsel %vm386, %v589, %v590
    %v592 = vrot.slane %v74, 2
    %v593 = vsel %vm386, %v590, %v592
    %v594 = vrot.slane %v126, 2
    %v595 = vrot.slane %v127, 2
    %v596 = vsel %vm386, %v594, %v595
    %v597 = vrot.slane %v128, 2
    %v598 = vsel %vm386, %v595, %v597
    %599 = vrot.lane.b32.xlu0 %v228, 4
    %v600 = vpop.permute.xlu0 %599
    %601 = vrot.lane.b32.xlu0 %v230, 4
    %v602 = vpop.permute.xlu0 %601
    %603 = vrot.lane.b32.xlu0 %v233, 4
    %v604 = vpop.permute.xlu0 %603
    %605 = vrot.lane.b32.xlu0 %v235, 4
    %v606 = vpop.permute.xlu0 %605
    %607 = vrot.lane.b32.xlu0 %v238, 4
    %v608 = vpop.permute.xlu0 %607
    %609 = vrot.lane.b32.xlu0 %v240, 4
    %v610 = vpop.permute.xlu0 %609
    %611 = vrot.lane.b32.xlu0 %v243, 4
    %v612 = vpop.permute.xlu0 %611
    %613 = vrot.lane.b32.xlu0 %v245, 4
    %v614 = vpop.permute.xlu0 %613
    %615 = vrot.lane.b32.xlu0 %v248, 4
    %v616 = vpop.permute.xlu0 %615
    %617 = vrot.lane.b32.xlu0 %v250, 4
    %v618 = vpop.permute.xlu0 %617
    %619 = vrot.lane.b32.xlu0 %v253, 4
    %v620 = vpop.permute.xlu0 %619
    %621 = vrot.lane.b32.xlu0 %v255, 4
    %v622 = vpop.permute.xlu0 %621
    %623 = vrot.lane.b32.xlu0 %v258, 4
    %v624 = vpop.permute.xlu0 %623
    %625 = vrot.lane.b32.xlu0 %v260, 4
    %v626 = vpop.permute.xlu0 %625
    %627 = vrot.lane.b32.xlu0 %v263, 4
    %v628 = vpop.permute.xlu0 %627
    %629 = vrot.lane.b32.xlu0 %v265, 4
    %v630 = vpop.permute.xlu0 %629
    %631 = vrot.lane.b32.xlu0 %v268, 4
    %v632 = vpop.permute.xlu0 %631
    %633 = vrot.lane.b32.xlu0 %v270, 4
    %v634 = vpop.permute.xlu0 %633
    %635 = vrot.lane.b32.xlu0 %v273, 4
    %v636 = vpop.permute.xlu0 %635
    %637 = vrot.lane.b32.xlu0 %v275, 4
    %v638 = vpop.permute.xlu0 %637
    %639 = vrot.lane.b32.xlu0 %v278, 4
    %v640 = vpop.permute.xlu0 %639
    %641 = vrot.lane.b32.xlu0 %v280, 4
    %v642 = vpop.permute.xlu0 %641
    %643 = vrot.lane.b32.xlu0 %v283, 4
    %v644 = vpop.permute.xlu0 %643
    %645 = vrot.lane.b32.xlu0 %v285, 4
    %v646 = vpop.permute.xlu0 %645
    %647 = vrot.lane.b32.xlu0 %v288, 4
    %v648 = vpop.permute.xlu0 %647
    %649 = vrot.lane.b32.xlu0 %v290, 4
    %v650 = vpop.permute.xlu0 %649
    %651 = vrot.lane.b32.xlu0 %v293, 4
    %v652 = vpop.permute.xlu0 %651
    %653 = vrot.lane.b32.xlu0 %v295, 4
    %v654 = vpop.permute.xlu0 %653
    %655 = vrot.lane.b32.xlu0 %v298, 4
    %v656 = vpop.permute.xlu0 %655
    %657 = vrot.lane.b32.xlu0 %v300, 4
    %v658 = vpop.permute.xlu0 %657
    %659 = vrot.lane.b32.xlu0 %v303, 4
    %v660 = vpop.permute.xlu0 %659
    %661 = vrot.lane.b32.xlu0 %v305, 4
    %v662 = vpop.permute.xlu0 %661
    %663 = vrot.lane.b32.xlu0 %v308, 4
    %v664 = vpop.permute.xlu0 %663
    %665 = vrot.lane.b32.xlu0 %v310, 4
    %v666 = vpop.permute.xlu0 %665
    %667 = vrot.lane.b32.xlu0 %v313, 4
    %v668 = vpop.permute.xlu0 %667
    %669 = vrot.lane.b32.xlu0 %v315, 4
    %v670 = vpop.permute.xlu0 %669
    %671 = vrot.lane.b32.xlu0 %v318, 4
    %v672 = vpop.permute.xlu0 %671
    %673 = vrot.lane.b32.xlu0 %v320, 4
    %v674 = vpop.permute.xlu0 %673
    %675 = vrot.lane.b32.xlu0 %v323, 4
    %v676 = vpop.permute.xlu0 %675
    %677 = vrot.lane.b32.xlu0 %v325, 4
    %v678 = vpop.permute.xlu0 %677
    %679 = vrot.lane.b32.xlu0 %v328, 4
    %v680 = vpop.permute.xlu0 %679
    %681 = vrot.lane.b32.xlu0 %v330, 4
    %v682 = vpop.permute.xlu0 %681
    %683 = vrot.lane.b32.xlu0 %v333, 4
    %v684 = vpop.permute.xlu0 %683
    %685 = vrot.lane.b32.xlu0 %v335, 4
    %v686 = vpop.permute.xlu0 %685
    %687 = vrot.lane.b32.xlu0 %v338, 4
    %v688 = vpop.permute.xlu0 %687
    %689 = vrot.lane.b32.xlu0 %v340, 4
    %v690 = vpop.permute.xlu0 %689
    %691 = vrot.lane.b32.xlu0 %v343, 4
    %v692 = vpop.permute.xlu0 %691
    %693 = vrot.lane.b32.xlu0 %v345, 4
    %v694 = vpop.permute.xlu0 %693
    %695 = vrot.lane.b32.xlu0 %v348, 4
    %v696 = vpop.permute.xlu0 %695
    %697 = vrot.lane.b32.xlu0 %v350, 4
    %v698 = vpop.permute.xlu0 %697
    %699 = vrot.lane.b32.xlu0 %v353, 4
    %v700 = vpop.permute.xlu0 %699
    %701 = vrot.lane.b32.xlu0 %v355, 4
    %v702 = vpop.permute.xlu0 %701
    %703 = vrot.lane.b32.xlu0 %v358, 4
    %v704 = vpop.permute.xlu0 %703
    %705 = vrot.lane.b32.xlu0 %v360, 4
    %v706 = vpop.permute.xlu0 %705
    %707 = vrot.lane.b32.xlu0 %v363, 4
    %v708 = vpop.permute.xlu0 %707
    %709 = vrot.lane.b32.xlu0 %v365, 4
    %v710 = vpop.permute.xlu0 %709
    %711 = vrot.lane.b32.xlu0 %v368, 4
    %v712 = vpop.permute.xlu0 %711
    %713 = vrot.lane.b32.xlu0 %v370, 4
    %v714 = vpop.permute.xlu0 %713
    %715 = vrot.lane.b32.xlu0 %v373, 4
    %v716 = vpop.permute.xlu0 %715
    %717 = vrot.lane.b32.xlu0 %v375, 4
    %v718 = vpop.permute.xlu0 %717
    %719 = vrot.lane.b32.xlu0 %v378, 4
    %v720 = vpop.permute.xlu0 %719
    %721 = vrot.lane.b32.xlu0 %v380, 4
    %v722 = vpop.permute.xlu0 %721
    %723 = vrot.lane.b32.xlu0 %v383, 4
    %v724 = vpop.permute.xlu0 %723
    %725 = vrot.lane.b32.xlu0 %v385, 4
    %v726 = vpop.permute.xlu0 %725
    %791 = vrot.lane.b32.xlu0 %v389, 8
    %v792 = vpop.permute.xlu0 %791
    %793 = vrot.lane.b32.xlu0 %v391, 8
    %v794 = vpop.permute.xlu0 %793
    %795 = vrot.lane.b32.xlu0 %v394, 8
    %v796 = vpop.permute.xlu0 %795
    %797 = vrot.lane.b32.xlu0 %v396, 8
    %v798 = vpop.permute.xlu0 %797
    %799 = vrot.lane.b32.xlu0 %v399, 8
    %v800 = vpop.permute.xlu0 %799
    %801 = vrot.lane.b32.xlu0 %v401, 8
    %v802 = vpop.permute.xlu0 %801
    %803 = vrot.lane.b32.xlu0 %v404, 8
    %v804 = vpop.permute.xlu0 %803
    %805 = vrot.lane.b32.xlu0 %v406, 8
    %v806 = vpop.permute.xlu0 %805
    %807 = vrot.lane.b32.xlu0 %v409, 8
    %v808 = vpop.permute.xlu0 %807
    %809 = vrot.lane.b32.xlu0 %v411, 8
    %v810 = vpop.permute.xlu0 %809
    %811 = vrot.lane.b32.xlu0 %v414, 8
    %v812 = vpop.permute.xlu0 %811
    %813 = vrot.lane.b32.xlu0 %v416, 8
    %v814 = vpop.permute.xlu0 %813
    %815 = vrot.lane.b32.xlu0 %v419, 8
    %v816 = vpop.permute.xlu0 %815
    %817 = vrot.lane.b32.xlu0 %v421, 8
    %v818 = vpop.permute.xlu0 %817
    %819 = vrot.lane.b32.xlu0 %v424, 8
    %v820 = vpop.permute.xlu0 %819
    %821 = vrot.lane.b32.xlu0 %v426, 8
    %v822 = vpop.permute.xlu0 %821
    %823 = vrot.lane.b32.xlu0 %v429, 8
    %v824 = vpop.permute.xlu0 %823
    %825 = vrot.lane.b32.xlu0 %v431, 8
    %v826 = vpop.permute.xlu0 %825
    %827 = vrot.lane.b32.xlu0 %v434, 8
    %v828 = vpop.permute.xlu0 %827
    %829 = vrot.lane.b32.xlu0 %v436, 8
    %v830 = vpop.permute.xlu0 %829
    %831 = vrot.lane.b32.xlu0 %v439, 8
    %v832 = vpop.permute.xlu0 %831
    %833 = vrot.lane.b32.xlu0 %v441, 8
    %v834 = vpop.permute.xlu0 %833
    %835 = vrot.lane.b32.xlu0 %v444, 8
    %v836 = vpop.permute.xlu0 %835
    %837 = vrot.lane.b32.xlu0 %v446, 8
    %v838 = vpop.permute.xlu0 %837
    %839 = vrot.lane.b32.xlu0 %v449, 8
    %v840 = vpop.permute.xlu0 %839
    %841 = vrot.lane.b32.xlu0 %v451, 8
    %v842 = vpop.permute.xlu0 %841
    %843 = vrot.lane.b32.xlu0 %v454, 8
    %v844 = vpop.permute.xlu0 %843
    %845 = vrot.lane.b32.xlu0 %v456, 8
    %v846 = vpop.permute.xlu0 %845
    %847 = vrot.lane.b32.xlu0 %v459, 8
    %v848 = vpop.permute.xlu0 %847
    %849 = vrot.lane.b32.xlu0 %v461, 8
    %v850 = vpop.permute.xlu0 %849
    %851 = vrot.lane.b32.xlu0 %v464, 8
    %v852 = vpop.permute.xlu0 %851
    %853 = vrot.lane.b32.xlu0 %v466, 8
    %v854 = vpop.permute.xlu0 %853
    %855 = vrot.lane.b32.xlu0 %v469, 8
    %v856 = vpop.permute.xlu0 %855
    %857 = vrot.lane.b32.xlu0 %v471, 8
    %v858 = vpop.permute.xlu0 %857
    %859 = vrot.lane.b32.xlu0 %v474, 8
    %v860 = vpop.permute.xlu0 %859
    %861 = vrot.lane.b32.xlu0 %v476, 8
    %v862 = vpop.permute.xlu0 %861
    %863 = vrot.lane.b32.xlu0 %v479, 8
    %v864 = vpop.permute.xlu0 %863
    %865 = vrot.lane.b32.xlu0 %v481, 8
    %v866 = vpop.permute.xlu0 %865
    %867 = vrot.lane.b32.xlu0 %v484, 8
    %v868 = vpop.permute.xlu0 %867
    %869 = vrot.lane.b32.xlu0 %v486, 8
    %v870 = vpop.permute.xlu0 %869
    %871 = vrot.lane.b32.xlu0 %v489, 8
    %v872 = vpop.permute.xlu0 %871
    %873 = vrot.lane.b32.xlu0 %v491, 8
    %v874 = vpop.permute.xlu0 %873
    %875 = vrot.lane.b32.xlu0 %v494, 8
    %v876 = vpop.permute.xlu0 %875
    %877 = vrot.lane.b32.xlu0 %v496, 8
    %v878 = vpop.permute.xlu0 %877
    %879 = vrot.lane.b32.xlu0 %v499, 8
    %v880 = vpop.permute.xlu0 %879
    %881 = vrot.lane.b32.xlu0 %v501, 8
    %v882 = vpop.permute.xlu0 %881
    %883 = vrot.lane.b32.xlu0 %v504, 8
    %v884 = vpop.permute.xlu0 %883
    %885 = vrot.lane.b32.xlu0 %v506, 8
    %v886 = vpop.permute.xlu0 %885
    %887 = vrot.lane.b32.xlu0 %v509, 8
    %v888 = vpop.permute.xlu0 %887
    %889 = vrot.lane.b32.xlu0 %v511, 8
    %v890 = vpop.permute.xlu0 %889
    %891 = vrot.lane.b32.xlu0 %v514, 8
    %v892 = vpop.permute.xlu0 %891
    %893 = vrot.lane.b32.xlu0 %v516, 8
    %v894 = vpop.permute.xlu0 %893
    %895 = vrot.lane.b32.xlu0 %v519, 8
    %v896 = vpop.permute.xlu0 %895
    %897 = vrot.lane.b32.xlu0 %v521, 8
    %v898 = vpop.permute.xlu0 %897
    %899 = vrot.lane.b32.xlu0 %v524, 8
    %v900 = vpop.permute.xlu0 %899
    %901 = vrot.lane.b32.xlu0 %v526, 8
    %v902 = vpop.permute.xlu0 %901
    %903 = vrot.lane.b32.xlu0 %v529, 8
    %v904 = vpop.permute.xlu0 %903
    %905 = vrot.lane.b32.xlu0 %v531, 8
    %v906 = vpop.permute.xlu0 %905
    %907 = vrot.lane.b32.xlu0 %v534, 8
    %v908 = vpop.permute.xlu0 %907
    %909 = vrot.lane.b32.xlu0 %v536, 8
    %v910 = vpop.permute.xlu0 %909
    %911 = vrot.lane.b32.xlu0 %v539, 8
    %v912 = vpop.permute.xlu0 %911
    %913 = vrot.lane.b32.xlu0 %v541, 8
    %v914 = vpop.permute.xlu0 %913
    %915 = vrot.lane.b32.xlu0 %v544, 8
    %v916 = vpop.permute.xlu0 %915
    %917 = vrot.lane.b32.xlu0 %v546, 8
    %v918 = vpop.permute.xlu0 %917
    %983 = vrot.lane.b32.xlu0 %v24, 12
    %v984 = vpop.permute.xlu0 %983
    %985 = vrot.lane.b32.xlu0 %v25, 12
    %v986 = vpop.permute.xlu0 %985
    %987 = vrot.lane.b32.xlu0 %v27, 12
    %v988 = vpop.permute.xlu0 %987
    %989 = vrot.lane.b32.xlu0 %v28, 12
    %v990 = vpop.permute.xlu0 %989
    %991 = vrot.lane.b32.xlu0 %v30, 12
    %v992 = vpop.permute.xlu0 %991
    %993 = vrot.lane.b32.xlu0 %v31, 12
    %v994 = vpop.permute.xlu0 %993
    %995 = vrot.lane.b32.xlu0 %v33, 12
    %v996 = vpop.permute.xlu0 %995
    %997 = vrot.lane.b32.xlu0 %v34, 12
    %v998 = vpop.permute.xlu0 %997
    %999 = vrot.lane.b32.xlu0 %v36, 12
    %v1000 = vpop.permute.xlu0 %999
    %1001 = vrot.lane.b32.xlu0 %v37, 12
    %v1002 = vpop.permute.xlu0 %1001
    %1003 = vrot.lane.b32.xlu0 %v39, 12
    %v1004 = vpop.permute.xlu0 %1003
    %1005 = vrot.lane.b32.xlu0 %v40, 12
    %v1006 = vpop.permute.xlu0 %1005
    %1007 = vrot.lane.b32.xlu0 %v42, 12
    %v1008 = vpop.permute.xlu0 %1007
    %1009 = vrot.lane.b32.xlu0 %v43, 12
    %v1010 = vpop.permute.xlu0 %1009
    %1011 = vrot.lane.b32.xlu0 %v45, 12
    %v1012 = vpop.permute.xlu0 %1011
    %1013 = vrot.lane.b32.xlu0 %v46, 12
    %v1014 = vpop.permute.xlu0 %1013
    %1015 = vrot.lane.b32.xlu0 %v48, 12
    %v1016 = vpop.permute.xlu0 %1015
    %1017 = vrot.lane.b32.xlu0 %v49, 12
    %v1018 = vpop.permute.xlu0 %1017
    %1019 = vrot.lane.b32.xlu0 %v51, 12
    %v1020 = vpop.permute.xlu0 %1019
    %1021 = vrot.lane.b32.xlu0 %v52, 12
    %v1022 = vpop.permute.xlu0 %1021
    %1023 = vrot.lane.b32.xlu0 %v54, 12
    %v1024 = vpop.permute.xlu0 %1023
    %1025 = vrot.lane.b32.xlu0 %v55, 12
    %v1026 = vpop.permute.xlu0 %1025
    %1027 = vrot.lane.b32.xlu0 %v57, 12
    %v1028 = vpop.permute.xlu0 %1027
    %1029 = vrot.lane.b32.xlu0 %v58, 12
    %v1030 = vpop.permute.xlu0 %1029
    %1031 = vrot.lane.b32.xlu0 %v60, 12
    %v1032 = vpop.permute.xlu0 %1031
    %1033 = vrot.lane.b32.xlu0 %v61, 12
    %v1034 = vpop.permute.xlu0 %1033
    %1035 = vrot.lane.b32.xlu0 %v63, 12
    %v1036 = vpop.permute.xlu0 %1035
    %1037 = vrot.lane.b32.xlu0 %v64, 12
    %v1038 = vpop.permute.xlu0 %1037
    %1039 = vrot.lane.b32.xlu0 %v66, 12
    %v1040 = vpop.permute.xlu0 %1039
    %1041 = vrot.lane.b32.xlu0 %v67, 12
    %v1042 = vpop.permute.xlu0 %1041
    %1043 = vrot.lane.b32.xlu0 %v69, 12
    %v1044 = vpop.permute.xlu0 %1043
    %1045 = vrot.lane.b32.xlu0 %v70, 12
    %v1046 = vpop.permute.xlu0 %1045
    %1047 = vrot.lane.b32.xlu0 %v78, 12
    %v1048 = vpop.permute.xlu0 %1047
    %1049 = vrot.lane.b32.xlu0 %v79, 12
    %v1050 = vpop.permute.xlu0 %1049
    %1051 = vrot.lane.b32.xlu0 %v81, 12
    %v1052 = vpop.permute.xlu0 %1051
    %1053 = vrot.lane.b32.xlu0 %v82, 12
    %v1054 = vpop.permute.xlu0 %1053
    %1055 = vrot.lane.b32.xlu0 %v84, 12
    %v1056 = vpop.permute.xlu0 %1055
    %1057 = vrot.lane.b32.xlu0 %v85, 12
    %v1058 = vpop.permute.xlu0 %1057
    %1059 = vrot.lane.b32.xlu0 %v87, 12
    %v1060 = vpop.permute.xlu0 %1059
    %1061 = vrot.lane.b32.xlu0 %v88, 12
    %v1062 = vpop.permute.xlu0 %1061
    %1063 = vrot.lane.b32.xlu0 %v90, 12
    %v1064 = vpop.permute.xlu0 %1063
    %1065 = vrot.lane.b32.xlu0 %v91, 12
    %v1066 = vpop.permute.xlu0 %1065
    %1067 = vrot.lane.b32.xlu0 %v93, 12
    %v1068 = vpop.permute.xlu0 %1067
    %1069 = vrot.lane.b32.xlu0 %v94, 12
    %v1070 = vpop.permute.xlu0 %1069
    %1071 = vrot.lane.b32.xlu0 %v96, 12
    %v1072 = vpop.permute.xlu0 %1071
    %1073 = vrot.lane.b32.xlu0 %v97, 12
    %v1074 = vpop.permute.xlu0 %1073
    %1075 = vrot.lane.b32.xlu0 %v99, 12
    %v1076 = vpop.permute.xlu0 %1075
    %1077 = vrot.lane.b32.xlu0 %v100, 12
    %v1078 = vpop.permute.xlu0 %1077
    %1079 = vrot.lane.b32.xlu0 %v102, 12
    %v1080 = vpop.permute.xlu0 %1079
    %1081 = vrot.lane.b32.xlu0 %v103, 12
    %v1082 = vpop.permute.xlu0 %1081
    %1083 = vrot.lane.b32.xlu0 %v105, 12
    %v1084 = vpop.permute.xlu0 %1083
    %1085 = vrot.lane.b32.xlu0 %v106, 12
    %v1086 = vpop.permute.xlu0 %1085
    %1087 = vrot.lane.b32.xlu0 %v108, 12
    %v1088 = vpop.permute.xlu0 %1087
    %1089 = vrot.lane.b32.xlu0 %v109, 12
    %v1090 = vpop.permute.xlu0 %1089
    %1091 = vrot.lane.b32.xlu0 %v111, 12
    %v1092 = vpop.permute.xlu0 %1091
    %1093 = vrot.lane.b32.xlu0 %v112, 12
    %v1094 = vpop.permute.xlu0 %1093
    %1095 = vrot.lane.b32.xlu0 %v114, 12
    %v1096 = vpop.permute.xlu0 %1095
    %1097 = vrot.lane.b32.xlu0 %v115, 12
    %v1098 = vpop.permute.xlu0 %1097
    %1099 = vrot.lane.b32.xlu0 %v117, 12
    %v1100 = vpop.permute.xlu0 %1099
    %1101 = vrot.lane.b32.xlu0 %v118, 12
    %v1102 = vpop.permute.xlu0 %1101
    %1103 = vrot.lane.b32.xlu0 %v120, 12
    %v1104 = vpop.permute.xlu0 %1103
    %1105 = vrot.lane.b32.xlu0 %v121, 12
    %v1106 = vpop.permute.xlu0 %1105
    %1107 = vrot.lane.b32.xlu0 %v123, 12
    %v1108 = vpop.permute.xlu0 %1107
    %1109 = vrot.lane.b32.xlu0 %v124, 12
    %v1110 = vpop.permute.xlu0 %1109
    %1175 = vrot.lane.b32.xlu0 %v233, 16
    %v1176 = vpop.permute.xlu0 %1175
    %1177 = vrot.lane.b32.xlu0 %v235, 16
    %v1178 = vpop.permute.xlu0 %1177
    %1179 = vrot.lane.b32.xlu0 %v238, 16
    %v1180 = vpop.permute.xlu0 %1179
    %1181 = vrot.lane.b32.xlu0 %v240, 16
    %v1182 = vpop.permute.xlu0 %1181
    %1183 = vrot.lane.b32.xlu0 %v243, 16
    %v1184 = vpop.permute.xlu0 %1183
    %1185 = vrot.lane.b32.xlu0 %v245, 16
    %v1186 = vpop.permute.xlu0 %1185
    %1187 = vrot.lane.b32.xlu0 %v248, 16
    %v1188 = vpop.permute.xlu0 %1187
    %1189 = vrot.lane.b32.xlu0 %v250, 16
    %v1190 = vpop.permute.xlu0 %1189
    %1191 = vrot.lane.b32.xlu0 %v253, 16
    %v1192 = vpop.permute.xlu0 %1191
    %1193 = vrot.lane.b32.xlu0 %v255, 16
    %v1194 = vpop.permute.xlu0 %1193
    %1195 = vrot.lane.b32.xlu0 %v258, 16
    %v1196 = vpop.permute.xlu0 %1195
    %1197 = vrot.lane.b32.xlu0 %v260, 16
    %v1198 = vpop.permute.xlu0 %1197
    %1199 = vrot.lane.b32.xlu0 %v263, 16
    %v1200 = vpop.permute.xlu0 %1199
    %1201 = vrot.lane.b32.xlu0 %v265, 16
    %v1202 = vpop.permute.xlu0 %1201
    %1203 = vrot.lane.b32.xlu0 %v268, 16
    %v1204 = vpop.permute.xlu0 %1203
    %1205 = vrot.lane.b32.xlu0 %v270, 16
    %v1206 = vpop.permute.xlu0 %1205
    %1207 = vrot.lane.b32.xlu0 %v273, 16
    %v1208 = vpop.permute.xlu0 %1207
    %1209 = vrot.lane.b32.xlu0 %v275, 16
    %v1210 = vpop.permute.xlu0 %1209
    %1211 = vrot.lane.b32.xlu0 %v278, 16
    %v1212 = vpop.permute.xlu0 %1211
    %1213 = vrot.lane.b32.xlu0 %v280, 16
    %v1214 = vpop.permute.xlu0 %1213
    %1215 = vrot.lane.b32.xlu0 %v283, 16
    %v1216 = vpop.permute.xlu0 %1215
    %1217 = vrot.lane.b32.xlu0 %v285, 16
    %v1218 = vpop.permute.xlu0 %1217
    %1219 = vrot.lane.b32.xlu0 %v288, 16
    %v1220 = vpop.permute.xlu0 %1219
    %1221 = vrot.lane.b32.xlu0 %v290, 16
    %v1222 = vpop.permute.xlu0 %1221
    %1223 = vrot.lane.b32.xlu0 %v293, 16
    %v1224 = vpop.permute.xlu0 %1223
    %1225 = vrot.lane.b32.xlu0 %v295, 16
    %v1226 = vpop.permute.xlu0 %1225
    %1227 = vrot.lane.b32.xlu0 %v298, 16
    %v1228 = vpop.permute.xlu0 %1227
    %1229 = vrot.lane.b32.xlu0 %v300, 16
    %v1230 = vpop.permute.xlu0 %1229
    %1231 = vrot.lane.b32.xlu0 %v303, 16
    %v1232 = vpop.permute.xlu0 %1231
    %1233 = vrot.lane.b32.xlu0 %v305, 16
    %v1234 = vpop.permute.xlu0 %1233
    %1235 = vrot.lane.b32.xlu0 %v555, 16
    %v1236 = vpop.permute.xlu0 %1235
    %1237 = vrot.lane.b32.xlu0 %v557, 16
    %v1238 = vpop.permute.xlu0 %1237
    %1239 = vrot.lane.b32.xlu0 %v313, 16
    %v1240 = vpop.permute.xlu0 %1239
    %1241 = vrot.lane.b32.xlu0 %v315, 16
    %v1242 = vpop.permute.xlu0 %1241
    %1243 = vrot.lane.b32.xlu0 %v318, 16
    %v1244 = vpop.permute.xlu0 %1243
    %1245 = vrot.lane.b32.xlu0 %v320, 16
    %v1246 = vpop.permute.xlu0 %1245
    %1247 = vrot.lane.b32.xlu0 %v323, 16
    %v1248 = vpop.permute.xlu0 %1247
    %1249 = vrot.lane.b32.xlu0 %v325, 16
    %v1250 = vpop.permute.xlu0 %1249
    %1251 = vrot.lane.b32.xlu0 %v328, 16
    %v1252 = vpop.permute.xlu0 %1251
    %1253 = vrot.lane.b32.xlu0 %v330, 16
    %v1254 = vpop.permute.xlu0 %1253
    %1255 = vrot.lane.b32.xlu0 %v333, 16
    %v1256 = vpop.permute.xlu0 %1255
    %1257 = vrot.lane.b32.xlu0 %v335, 16
    %v1258 = vpop.permute.xlu0 %1257
    %1259 = vrot.lane.b32.xlu0 %v338, 16
    %v1260 = vpop.permute.xlu0 %1259
    %1261 = vrot.lane.b32.xlu0 %v340, 16
    %v1262 = vpop.permute.xlu0 %1261
    %1263 = vrot.lane.b32.xlu0 %v343, 16
    %v1264 = vpop.permute.xlu0 %1263
    %1265 = vrot.lane.b32.xlu0 %v345, 16
    %v1266 = vpop.permute.xlu0 %1265
    %1267 = vrot.lane.b32.xlu0 %v348, 16
    %v1268 = vpop.permute.xlu0 %1267
    %1269 = vrot.lane.b32.xlu0 %v350, 16
    %v1270 = vpop.permute.xlu0 %1269
    %1271 = vrot.lane.b32.xlu0 %v353, 16
    %v1272 = vpop.permute.xlu0 %1271
    %1273 = vrot.lane.b32.xlu0 %v355, 16
    %v1274 = vpop.permute.xlu0 %1273
    %1275 = vrot.lane.b32.xlu0 %v358, 16
    %v1276 = vpop.permute.xlu0 %1275
    %1277 = vrot.lane.b32.xlu0 %v360, 16
    %v1278 = vpop.permute.xlu0 %1277
    %1279 = vrot.lane.b32.xlu0 %v363, 16
    %v1280 = vpop.permute.xlu0 %1279
    %1281 = vrot.lane.b32.xlu0 %v365, 16
    %v1282 = vpop.permute.xlu0 %1281
    %1283 = vrot.lane.b32.xlu0 %v368, 16
    %v1284 = vpop.permute.xlu0 %1283
    %1285 = vrot.lane.b32.xlu0 %v370, 16
    %v1286 = vpop.permute.xlu0 %1285
    %1287 = vrot.lane.b32.xlu0 %v373, 16
    %v1288 = vpop.permute.xlu0 %1287
    %1289 = vrot.lane.b32.xlu0 %v375, 16
    %v1290 = vpop.permute.xlu0 %1289
    %1291 = vrot.lane.b32.xlu0 %v378, 16
    %v1292 = vpop.permute.xlu0 %1291
    %1293 = vrot.lane.b32.xlu0 %v380, 16
    %v1294 = vpop.permute.xlu0 %1293
    %1295 = vrot.lane.b32.xlu0 %v383, 16
    %v1296 = vpop.permute.xlu0 %1295
    %1297 = vrot.lane.b32.xlu0 %v385, 16
    %v1298 = vpop.permute.xlu0 %1297
    %1299 = vrot.lane.b32.xlu0 %v560, 16
    %v1300 = vpop.permute.xlu0 %1299
    %1301 = vrot.lane.b32.xlu0 %v562, 16
    %v1302 = vpop.permute.xlu0 %1301
    %1367 = vrot.lane.b32.xlu0 %v394, 20
    %v1368 = vpop.permute.xlu0 %1367
    %1369 = vrot.lane.b32.xlu0 %v396, 20
    %v1370 = vpop.permute.xlu0 %1369
    %1371 = vrot.lane.b32.xlu0 %v399, 20
    %v1372 = vpop.permute.xlu0 %1371
    %1373 = vrot.lane.b32.xlu0 %v401, 20
    %v1374 = vpop.permute.xlu0 %1373
    %1375 = vrot.lane.b32.xlu0 %v404, 20
    %v1376 = vpop.permute.xlu0 %1375
    %1377 = vrot.lane.b32.xlu0 %v406, 20
    %v1378 = vpop.permute.xlu0 %1377
    %1379 = vrot.lane.b32.xlu0 %v409, 20
    %v1380 = vpop.permute.xlu0 %1379
    %1381 = vrot.lane.b32.xlu0 %v411, 20
    %v1382 = vpop.permute.xlu0 %1381
    %1383 = vrot.lane.b32.xlu0 %v414, 20
    %v1384 = vpop.permute.xlu0 %1383
    %1385 = vrot.lane.b32.xlu0 %v416, 20
    %v1386 = vpop.permute.xlu0 %1385
    %1387 = vrot.lane.b32.xlu0 %v419, 20
    %v1388 = vpop.permute.xlu0 %1387
    %1389 = vrot.lane.b32.xlu0 %v421, 20
    %v1390 = vpop.permute.xlu0 %1389
    %1391 = vrot.lane.b32.xlu0 %v424, 20
    %v1392 = vpop.permute.xlu0 %1391
    %1393 = vrot.lane.b32.xlu0 %v426, 20
    %v1394 = vpop.permute.xlu0 %1393
    %1395 = vrot.lane.b32.xlu0 %v429, 20
    %v1396 = vpop.permute.xlu0 %1395
    %1397 = vrot.lane.b32.xlu0 %v431, 20
    %v1398 = vpop.permute.xlu0 %1397
    %1399 = vrot.lane.b32.xlu0 %v434, 20
    %v1400 = vpop.permute.xlu0 %1399
    %1401 = vrot.lane.b32.xlu0 %v436, 20
    %v1402 = vpop.permute.xlu0 %1401
    %1403 = vrot.lane.b32.xlu0 %v439, 20
    %v1404 = vpop.permute.xlu0 %1403
    %1405 = vrot.lane.b32.xlu0 %v441, 20
    %v1406 = vpop.permute.xlu0 %1405
    %1407 = vrot.lane.b32.xlu0 %v444, 20
    %v1408 = vpop.permute.xlu0 %1407
    %1409 = vrot.lane.b32.xlu0 %v446, 20
    %v1410 = vpop.permute.xlu0 %1409
    %1411 = vrot.lane.b32.xlu0 %v449, 20
    %v1412 = vpop.permute.xlu0 %1411
    %1413 = vrot.lane.b32.xlu0 %v451, 20
    %v1414 = vpop.permute.xlu0 %1413
    %1415 = vrot.lane.b32.xlu0 %v454, 20
    %v1416 = vpop.permute.xlu0 %1415
    %1417 = vrot.lane.b32.xlu0 %v456, 20
    %v1418 = vpop.permute.xlu0 %1417
    %1419 = vrot.lane.b32.xlu0 %v459, 20
    %v1420 = vpop.permute.xlu0 %1419
    %1421 = vrot.lane.b32.xlu0 %v461, 20
    %v1422 = vpop.permute.xlu0 %1421
    %1423 = vrot.lane.b32.xlu0 %v464, 20
    %v1424 = vpop.permute.xlu0 %1423
    %1425 = vrot.lane.b32.xlu0 %v466, 20
    %v1426 = vpop.permute.xlu0 %1425
    %1427 = vrot.lane.b32.xlu0 %v565, 20
    %v1428 = vpop.permute.xlu0 %1427
    %1429 = vrot.lane.b32.xlu0 %v567, 20
    %v1430 = vpop.permute.xlu0 %1429
    %1431 = vrot.lane.b32.xlu0 %v474, 20
    %v1432 = vpop.permute.xlu0 %1431
    %1433 = vrot.lane.b32.xlu0 %v476, 20
    %v1434 = vpop.permute.xlu0 %1433
    %1435 = vrot.lane.b32.xlu0 %v479, 20
    %v1436 = vpop.permute.xlu0 %1435
    %1437 = vrot.lane.b32.xlu0 %v481, 20
    %v1438 = vpop.permute.xlu0 %1437
    %1439 = vrot.lane.b32.xlu0 %v484, 20
    %v1440 = vpop.permute.xlu0 %1439
    %1441 = vrot.lane.b32.xlu0 %v486, 20
    %v1442 = vpop.permute.xlu0 %1441
    %1443 = vrot.lane.b32.xlu0 %v489, 20
    %v1444 = vpop.permute.xlu0 %1443
    %1445 = vrot.lane.b32.xlu0 %v491, 20
    %v1446 = vpop.permute.xlu0 %1445
    %1447 = vrot.lane.b32.xlu0 %v494, 20
    %v1448 = vpop.permute.xlu0 %1447
    %1449 = vrot.lane.b32.xlu0 %v496, 20
    %v1450 = vpop.permute.xlu0 %1449
    %1451 = vrot.lane.b32.xlu0 %v499, 20
    %v1452 = vpop.permute.xlu0 %1451
    %1453 = vrot.lane.b32.xlu0 %v501, 20
    %v1454 = vpop.permute.xlu0 %1453
    %1455 = vrot.lane.b32.xlu0 %v504, 20
    %v1456 = vpop.permute.xlu0 %1455
    %1457 = vrot.lane.b32.xlu0 %v506, 20
    %v1458 = vpop.permute.xlu0 %1457
    %1459 = vrot.lane.b32.xlu0 %v509, 20
    %v1460 = vpop.permute.xlu0 %1459
    %1461 = vrot.lane.b32.xlu0 %v511, 20
    %v1462 = vpop.permute.xlu0 %1461
    %1463 = vrot.lane.b32.xlu0 %v514, 20
    %v1464 = vpop.permute.xlu0 %1463
    %1465 = vrot.lane.b32.xlu0 %v516, 20
    %v1466 = vpop.permute.xlu0 %1465
    %1467 = vrot.lane.b32.xlu0 %v519, 20
    %v1468 = vpop.permute.xlu0 %1467
    %1469 = vrot.lane.b32.xlu0 %v521, 20
    %v1470 = vpop.permute.xlu0 %1469
    %1471 = vrot.lane.b32.xlu0 %v524, 20
    %v1472 = vpop.permute.xlu0 %1471
    %1473 = vrot.lane.b32.xlu0 %v526, 20
    %v1474 = vpop.permute.xlu0 %1473
    %1475 = vrot.lane.b32.xlu0 %v529, 20
    %v1476 = vpop.permute.xlu0 %1475
    %1477 = vrot.lane.b32.xlu0 %v531, 20
    %v1478 = vpop.permute.xlu0 %1477
    %1479 = vrot.lane.b32.xlu0 %v534, 20
    %v1480 = vpop.permute.xlu0 %1479
    %1481 = vrot.lane.b32.xlu0 %v536, 20
    %v1482 = vpop.permute.xlu0 %1481
    %1483 = vrot.lane.b32.xlu0 %v539, 20
    %v1484 = vpop.permute.xlu0 %1483
    %1485 = vrot.lane.b32.xlu0 %v541, 20
    %v1486 = vpop.permute.xlu0 %1485
    %1487 = vrot.lane.b32.xlu0 %v544, 20
    %v1488 = vpop.permute.xlu0 %1487
    %1489 = vrot.lane.b32.xlu0 %v546, 20
    %v1490 = vpop.permute.xlu0 %1489
    %1491 = vrot.lane.b32.xlu0 %v570, 20
    %v1492 = vpop.permute.xlu0 %1491
    %1493 = vrot.lane.b32.xlu0 %v572, 20
    %v1494 = vpop.permute.xlu0 %1493
    %1559 = vrot.lane.b32.xlu0 %v27, 24
    %v1560 = vpop.permute.xlu0 %1559
    %1561 = vrot.lane.b32.xlu0 %v28, 24
    %v1562 = vpop.permute.xlu0 %1561
    %1563 = vrot.lane.b32.xlu0 %v30, 24
    %v1564 = vpop.permute.xlu0 %1563
    %1565 = vrot.lane.b32.xlu0 %v31, 24
    %v1566 = vpop.permute.xlu0 %1565
    %1567 = vrot.lane.b32.xlu0 %v33, 24
    %v1568 = vpop.permute.xlu0 %1567
    %1569 = vrot.lane.b32.xlu0 %v34, 24
    %v1570 = vpop.permute.xlu0 %1569
    %1571 = vrot.lane.b32.xlu0 %v36, 24
    %v1572 = vpop.permute.xlu0 %1571
    %1573 = vrot.lane.b32.xlu0 %v37, 24
    %v1574 = vpop.permute.xlu0 %1573
    %1575 = vrot.lane.b32.xlu0 %v39, 24
    %v1576 = vpop.permute.xlu0 %1575
    %1577 = vrot.lane.b32.xlu0 %v40, 24
    %v1578 = vpop.permute.xlu0 %1577
    %1579 = vrot.lane.b32.xlu0 %v42, 24
    %v1580 = vpop.permute.xlu0 %1579
    %1581 = vrot.lane.b32.xlu0 %v43, 24
    %v1582 = vpop.permute.xlu0 %1581
    %1583 = vrot.lane.b32.xlu0 %v45, 24
    %v1584 = vpop.permute.xlu0 %1583
    %1585 = vrot.lane.b32.xlu0 %v46, 24
    %v1586 = vpop.permute.xlu0 %1585
    %1587 = vrot.lane.b32.xlu0 %v48, 24
    %v1588 = vpop.permute.xlu0 %1587
    %1589 = vrot.lane.b32.xlu0 %v49, 24
    %v1590 = vpop.permute.xlu0 %1589
    %1591 = vrot.lane.b32.xlu0 %v51, 24
    %v1592 = vpop.permute.xlu0 %1591
    %1593 = vrot.lane.b32.xlu0 %v52, 24
    %v1594 = vpop.permute.xlu0 %1593
    %1595 = vrot.lane.b32.xlu0 %v54, 24
    %v1596 = vpop.permute.xlu0 %1595
    %1597 = vrot.lane.b32.xlu0 %v55, 24
    %v1598 = vpop.permute.xlu0 %1597
    %1599 = vrot.lane.b32.xlu0 %v57, 24
    %v1600 = vpop.permute.xlu0 %1599
    %1601 = vrot.lane.b32.xlu0 %v58, 24
    %v1602 = vpop.permute.xlu0 %1601
    %1603 = vrot.lane.b32.xlu0 %v60, 24
    %v1604 = vpop.permute.xlu0 %1603
    %1605 = vrot.lane.b32.xlu0 %v61, 24
    %v1606 = vpop.permute.xlu0 %1605
    %1607 = vrot.lane.b32.xlu0 %v63, 24
    %v1608 = vpop.permute.xlu0 %1607
    %1609 = vrot.lane.b32.xlu0 %v64, 24
    %v1610 = vpop.permute.xlu0 %1609
    %1611 = vrot.lane.b32.xlu0 %v66, 24
    %v1612 = vpop.permute.xlu0 %1611
    %1613 = vrot.lane.b32.xlu0 %v67, 24
    %v1614 = vpop.permute.xlu0 %1613
    %1615 = vrot.lane.b32.xlu0 %v69, 24
    %v1616 = vpop.permute.xlu0 %1615
    %1617 = vrot.lane.b32.xlu0 %v70, 24
    %v1618 = vpop.permute.xlu0 %1617
    %1619 = vrot.lane.b32.xlu0 %v72, 24
    %v1620 = vpop.permute.xlu0 %1619
    %1621 = vrot.lane.b32.xlu0 %v73, 24
    %v1622 = vpop.permute.xlu0 %1621
    %1623 = vrot.lane.b32.xlu0 %v81, 24
    %v1624 = vpop.permute.xlu0 %1623
    %1625 = vrot.lane.b32.xlu0 %v82, 24
    %v1626 = vpop.permute.xlu0 %1625
    %1627 = vrot.lane.b32.xlu0 %v84, 24
    %v1628 = vpop.permute.xlu0 %1627
    %1629 = vrot.lane.b32.xlu0 %v85, 24
    %v1630 = vpop.permute.xlu0 %1629
    %1631 = vrot.lane.b32.xlu0 %v87, 24
    %v1632 = vpop.permute.xlu0 %1631
    %1633 = vrot.lane.b32.xlu0 %v88, 24
    %v1634 = vpop.permute.xlu0 %1633
    %1635 = vrot.lane.b32.xlu0 %v90, 24
    %v1636 = vpop.permute.xlu0 %1635
    %1637 = vrot.lane.b32.xlu0 %v91, 24
    %v1638 = vpop.permute.xlu0 %1637
    %1639 = vrot.lane.b32.xlu0 %v93, 24
    %v1640 = vpop.permute.xlu0 %1639
    %1641 = vrot.lane.b32.xlu0 %v94, 24
    %v1642 = vpop.permute.xlu0 %1641
    %1643 = vrot.lane.b32.xlu0 %v96, 24
    %v1644 = vpop.permute.xlu0 %1643
    %1645 = vrot.lane.b32.xlu0 %v97, 24
    %v1646 = vpop.permute.xlu0 %1645
    %1647 = vrot.lane.b32.xlu0 %v99, 24
    %v1648 = vpop.permute.xlu0 %1647
    %1649 = vrot.lane.b32.xlu0 %v100, 24
    %v1650 = vpop.permute.xlu0 %1649
    %1651 = vrot.lane.b32.xlu0 %v102, 24
    %v1652 = vpop.permute.xlu0 %1651
    %1653 = vrot.lane.b32.xlu0 %v103, 24
    %v1654 = vpop.permute.xlu0 %1653
    %1655 = vrot.lane.b32.xlu0 %v105, 24
    %v1656 = vpop.permute.xlu0 %1655
    %1657 = vrot.lane.b32.xlu0 %v106, 24
    %v1658 = vpop.permute.xlu0 %1657
    %1659 = vrot.lane.b32.xlu0 %v108, 24
    %v1660 = vpop.permute.xlu0 %1659
    %1661 = vrot.lane.b32.xlu0 %v109, 24
    %v1662 = vpop.permute.xlu0 %1661
    %1663 = vrot.lane.b32.xlu0 %v111, 24
    %v1664 = vpop.permute.xlu0 %1663
    %1665 = vrot.lane.b32.xlu0 %v112, 24
    %v1666 = vpop.permute.xlu0 %1665
    %1667 = vrot.lane.b32.xlu0 %v114, 24
    %v1668 = vpop.permute.xlu0 %1667
    %1669 = vrot.lane.b32.xlu0 %v115, 24
    %v1670 = vpop.permute.xlu0 %1669
    %1671 = vrot.lane.b32.xlu0 %v117, 24
    %v1672 = vpop.permute.xlu0 %1671
    %1673 = vrot.lane.b32.xlu0 %v118, 24
    %v1674 = vpop.permute.xlu0 %1673
    %1675 = vrot.lane.b32.xlu0 %v120, 24
    %v1676 = vpop.permute.xlu0 %1675
    %1677 = vrot.lane.b32.xlu0 %v121, 24
    %v1678 = vpop.permute.xlu0 %1677
    %1679 = vrot.lane.b32.xlu0 %v123, 24
    %v1680 = vpop.permute.xlu0 %1679
    %1681 = vrot.lane.b32.xlu0 %v124, 24
    %v1682 = vpop.permute.xlu0 %1681
    %1683 = vrot.lane.b32.xlu0 %v126, 24
    %v1684 = vpop.permute.xlu0 %1683
    %1685 = vrot.lane.b32.xlu0 %v127, 24
    %v1686 = vpop.permute.xlu0 %1685
    %1751 = vrot.lane.b32.xlu0 %v238, 28
    %v1752 = vpop.permute.xlu0 %1751
    %1753 = vrot.lane.b32.xlu0 %v240, 28
    %v1754 = vpop.permute.xlu0 %1753
    %1755 = vrot.lane.b32.xlu0 %v243, 28
    %v1756 = vpop.permute.xlu0 %1755
    %1757 = vrot.lane.b32.xlu0 %v245, 28
    %v1758 = vpop.permute.xlu0 %1757
    %1759 = vrot.lane.b32.xlu0 %v248, 28
    %v1760 = vpop.permute.xlu0 %1759
    %1761 = vrot.lane.b32.xlu0 %v250, 28
    %v1762 = vpop.permute.xlu0 %1761
    %1763 = vrot.lane.b32.xlu0 %v253, 28
    %v1764 = vpop.permute.xlu0 %1763
    %1765 = vrot.lane.b32.xlu0 %v255, 28
    %v1766 = vpop.permute.xlu0 %1765
    %1767 = vrot.lane.b32.xlu0 %v258, 28
    %v1768 = vpop.permute.xlu0 %1767
    %1769 = vrot.lane.b32.xlu0 %v260, 28
    %v1770 = vpop.permute.xlu0 %1769
    %1771 = vrot.lane.b32.xlu0 %v263, 28
    %v1772 = vpop.permute.xlu0 %1771
    %1773 = vrot.lane.b32.xlu0 %v265, 28
    %v1774 = vpop.permute.xlu0 %1773
    %1775 = vrot.lane.b32.xlu0 %v268, 28
    %v1776 = vpop.permute.xlu0 %1775
    %1777 = vrot.lane.b32.xlu0 %v270, 28
    %v1778 = vpop.permute.xlu0 %1777
    %1779 = vrot.lane.b32.xlu0 %v273, 28
    %v1780 = vpop.permute.xlu0 %1779
    %1781 = vrot.lane.b32.xlu0 %v275, 28
    %v1782 = vpop.permute.xlu0 %1781
    %1783 = vrot.lane.b32.xlu0 %v278, 28
    %v1784 = vpop.permute.xlu0 %1783
    %1785 = vrot.lane.b32.xlu0 %v280, 28
    %v1786 = vpop.permute.xlu0 %1785
    %1787 = vrot.lane.b32.xlu0 %v283, 28
    %v1788 = vpop.permute.xlu0 %1787
    %1789 = vrot.lane.b32.xlu0 %v285, 28
    %v1790 = vpop.permute.xlu0 %1789
    %1791 = vrot.lane.b32.xlu0 %v288, 28
    %v1792 = vpop.permute.xlu0 %1791
    %1793 = vrot.lane.b32.xlu0 %v290, 28
    %v1794 = vpop.permute.xlu0 %1793
    %1795 = vrot.lane.b32.xlu0 %v293, 28
    %v1796 = vpop.permute.xlu0 %1795
    %1797 = vrot.lane.b32.xlu0 %v295, 28
    %v1798 = vpop.permute.xlu0 %1797
    %1799 = vrot.lane.b32.xlu0 %v298, 28
    %v1800 = vpop.permute.xlu0 %1799
    %1801 = vrot.lane.b32.xlu0 %v300, 28
    %v1802 = vpop.permute.xlu0 %1801
    %1803 = vrot.lane.b32.xlu0 %v303, 28
    %v1804 = vpop.permute.xlu0 %1803
    %1805 = vrot.lane.b32.xlu0 %v305, 28
    %v1806 = vpop.permute.xlu0 %1805
    %1807 = vrot.lane.b32.xlu0 %v555, 28
    %v1808 = vpop.permute.xlu0 %1807
    %1809 = vrot.lane.b32.xlu0 %v557, 28
    %v1810 = vpop.permute.xlu0 %1809
    %1811 = vrot.lane.b32.xlu0 %v581, 28
    %v1812 = vpop.permute.xlu0 %1811
    %1813 = vrot.lane.b32.xlu0 %v583, 28
    %v1814 = vpop.permute.xlu0 %1813
    %1815 = vrot.lane.b32.xlu0 %v318, 28
    %v1816 = vpop.permute.xlu0 %1815
    %1817 = vrot.lane.b32.xlu0 %v320, 28
    %v1818 = vpop.permute.xlu0 %1817
    %1819 = vrot.lane.b32.xlu0 %v323, 28
    %v1820 = vpop.permute.xlu0 %1819
    %1821 = vrot.lane.b32.xlu0 %v325, 28
    %v1822 = vpop.permute.xlu0 %1821
    %1823 = vrot.lane.b32.xlu0 %v328, 28
    %v1824 = vpop.permute.xlu0 %1823
    %1825 = vrot.lane.b32.xlu0 %v330, 28
    %v1826 = vpop.permute.xlu0 %1825
    %1827 = vrot.lane.b32.xlu0 %v333, 28
    %v1828 = vpop.permute.xlu0 %1827
    %1829 = vrot.lane.b32.xlu0 %v335, 28
    %v1830 = vpop.permute.xlu0 %1829
    %1831 = vrot.lane.b32.xlu0 %v338, 28
    %v1832 = vpop.permute.xlu0 %1831
    %1833 = vrot.lane.b32.xlu0 %v340, 28
    %v1834 = vpop.permute.xlu0 %1833
    %1835 = vrot.lane.b32.xlu0 %v343, 28
    %v1836 = vpop.permute.xlu0 %1835
    %1837 = vrot.lane.b32.xlu0 %v345, 28
    %v1838 = vpop.permute.xlu0 %1837
    %1839 = vrot.lane.b32.xlu0 %v348, 28
    %v1840 = vpop.permute.xlu0 %1839
    %1841 = vrot.lane.b32.xlu0 %v350, 28
    %v1842 = vpop.permute.xlu0 %1841
    %1843 = vrot.lane.b32.xlu0 %v353, 28
    %v1844 = vpop.permute.xlu0 %1843
    %1845 = vrot.lane.b32.xlu0 %v355, 28
    %v1846 = vpop.permute.xlu0 %1845
    %1847 = vrot.lane.b32.xlu0 %v358, 28
    %v1848 = vpop.permute.xlu0 %1847
    %1849 = vrot.lane.b32.xlu0 %v360, 28
    %v1850 = vpop.permute.xlu0 %1849
    %1851 = vrot.lane.b32.xlu0 %v363, 28
    %v1852 = vpop.permute.xlu0 %1851
    %1853 = vrot.lane.b32.xlu0 %v365, 28
    %v1854 = vpop.permute.xlu0 %1853
    %1855 = vrot.lane.b32.xlu0 %v368, 28
    %v1856 = vpop.permute.xlu0 %1855
    %1857 = vrot.lane.b32.xlu0 %v370, 28
    %v1858 = vpop.permute.xlu0 %1857
    %1859 = vrot.lane.b32.xlu0 %v373, 28
    %v1860 = vpop.permute.xlu0 %1859
    %1861 = vrot.lane.b32.xlu0 %v375, 28
    %v1862 = vpop.permute.xlu0 %1861
    %1863 = vrot.lane.b32.xlu0 %v378, 28
    %v1864 = vpop.permute.xlu0 %1863
    %1865 = vrot.lane.b32.xlu0 %v380, 28
    %v1866 = vpop.permute.xlu0 %1865
    %1867 = vrot.lane.b32.xlu0 %v383, 28
    %v1868 = vpop.permute.xlu0 %1867
    %1869 = vrot.lane.b32.xlu0 %v385, 28
    %v1870 = vpop.permute.xlu0 %1869
    %1871 = vrot.lane.b32.xlu0 %v560, 28
    %v1872 = vpop.permute.xlu0 %1871
    %1873 = vrot.lane.b32.xlu0 %v562, 28
    %v1874 = vpop.permute.xlu0 %1873
    %1875 = vrot.lane.b32.xlu0 %v586, 28
    %v1876 = vpop.permute.xlu0 %1875
    %1877 = vrot.lane.b32.xlu0 %v588, 28
    %v1878 = vpop.permute.xlu0 %1877
    %1943 = vrot.lane.b32.xlu0 %v399, 32
    %v1944 = vpop.permute.xlu0 %1943
    %1945 = vrot.lane.b32.xlu0 %v401, 32
    %v1946 = vpop.permute.xlu0 %1945
    %1947 = vrot.lane.b32.xlu0 %v404, 32
    %v1948 = vpop.permute.xlu0 %1947
    %1949 = vrot.lane.b32.xlu0 %v406, 32
    %v1950 = vpop.permute.xlu0 %1949
    %1951 = vrot.lane.b32.xlu0 %v409, 32
    %v1952 = vpop.permute.xlu0 %1951
    %1953 = vrot.lane.b32.xlu0 %v411, 32
    %v1954 = vpop.permute.xlu0 %1953
    %1955 = vrot.lane.b32.xlu0 %v414, 32
    %v1956 = vpop.permute.xlu0 %1955
    %1957 = vrot.lane.b32.xlu0 %v416, 32
    %v1958 = vpop.permute.xlu0 %1957
    %1959 = vrot.lane.b32.xlu0 %v419, 32
    %v1960 = vpop.permute.xlu0 %1959
    %1961 = vrot.lane.b32.xlu0 %v421, 32
    %v1962 = vpop.permute.xlu0 %1961
    %1963 = vrot.lane.b32.xlu0 %v424, 32
    %v1964 = vpop.permute.xlu0 %1963
    %1965 = vrot.lane.b32.xlu0 %v426, 32
    %v1966 = vpop.permute.xlu0 %1965
    %1967 = vrot.lane.b32.xlu0 %v429, 32
    %v1968 = vpop.permute.xlu0 %1967
    %1969 = vrot.lane.b32.xlu0 %v431, 32
    %v1970 = vpop.permute.xlu0 %1969
    %1971 = vrot.lane.b32.xlu0 %v434, 32
    %v1972 = vpop.permute.xlu0 %1971
    %1973 = vrot.lane.b32.xlu0 %v436, 32
    %v1974 = vpop.permute.xlu0 %1973
    %1975 = vrot.lane.b32.xlu0 %v439, 32
    %v1976 = vpop.permute.xlu0 %1975
    %1977 = vrot.lane.b32.xlu0 %v441, 32
    %v1978 = vpop.permute.xlu0 %1977
    %1979 = vrot.lane.b32.xlu0 %v444, 32
    %v1980 = vpop.permute.xlu0 %1979
    %1981 = vrot.lane.b32.xlu0 %v446, 32
    %v1982 = vpop.permute.xlu0 %1981
    %1983 = vrot.lane.b32.xlu0 %v449, 32
    %v1984 = vpop.permute.xlu0 %1983
    %1985 = vrot.lane.b32.xlu0 %v451, 32
    %v1986 = vpop.permute.xlu0 %1985
    %1987 = vrot.lane.b32.xlu0 %v454, 32
    %v1988 = vpop.permute.xlu0 %1987
    %1989 = vrot.lane.b32.xlu0 %v456, 32
    %v1990 = vpop.permute.xlu0 %1989
    %1991 = vrot.lane.b32.xlu0 %v459, 32
    %v1992 = vpop.permute.xlu0 %1991
    %1993 = vrot.lane.b32.xlu0 %v461, 32
    %v1994 = vpop.permute.xlu0 %1993
    %1995 = vrot.lane.b32.xlu0 %v464, 32
    %v1996 = vpop.permute.xlu0 %1995
    %1997 = vrot.lane.b32.xlu0 %v466, 32
    %v1998 = vpop.permute.xlu0 %1997
    %1999 = vrot.lane.b32.xlu0 %v565, 32
    %v2000 = vpop.permute.xlu0 %1999
    %2001 = vrot.lane.b32.xlu0 %v567, 32
    %v2002 = vpop.permute.xlu0 %2001
    %2003 = vrot.lane.b32.xlu0 %v591, 32
    %v2004 = vpop.permute.xlu0 %2003
    %2005 = vrot.lane.b32.xlu0 %v593, 32
    %v2006 = vpop.permute.xlu0 %2005
    %2007 = vrot.lane.b32.xlu0 %v479, 32
    %v2008 = vpop.permute.xlu0 %2007
    %2009 = vrot.lane.b32.xlu0 %v481, 32
    %v2010 = vpop.permute.xlu0 %2009
    %2011 = vrot.lane.b32.xlu0 %v484, 32
    %v2012 = vpop.permute.xlu0 %2011
    %2013 = vrot.lane.b32.xlu0 %v486, 32
    %v2014 = vpop.permute.xlu0 %2013
    %2015 = vrot.lane.b32.xlu0 %v489, 32
    %v2016 = vpop.permute.xlu0 %2015
    %2017 = vrot.lane.b32.xlu0 %v491, 32
    %v2018 = vpop.permute.xlu0 %2017
    %2019 = vrot.lane.b32.xlu0 %v494, 32
    %v2020 = vpop.permute.xlu0 %2019
    %2021 = vrot.lane.b32.xlu0 %v496, 32
    %v2022 = vpop.permute.xlu0 %2021
    %2023 = vrot.lane.b32.xlu0 %v499, 32
    %v2024 = vpop.permute.xlu0 %2023
    %2025 = vrot.lane.b32.xlu0 %v501, 32
    %v2026 = vpop.permute.xlu0 %2025
    %2027 = vrot.lane.b32.xlu0 %v504, 32
    %v2028 = vpop.permute.xlu0 %2027
    %2029 = vrot.lane.b32.xlu0 %v506, 32
    %v2030 = vpop.permute.xlu0 %2029
    %2031 = vrot.lane.b32.xlu0 %v509, 32
    %v2032 = vpop.permute.xlu0 %2031
    %2033 = vrot.lane.b32.xlu0 %v511, 32
    %v2034 = vpop.permute.xlu0 %2033
    %2035 = vrot.lane.b32.xlu0 %v514, 32
    %v2036 = vpop.permute.xlu0 %2035
    %2037 = vrot.lane.b32.xlu0 %v516, 32
    %v2038 = vpop.permute.xlu0 %2037
    %2039 = vrot.lane.b32.xlu0 %v519, 32
    %v2040 = vpop.permute.xlu0 %2039
    %2041 = vrot.lane.b32.xlu0 %v521, 32
    %v2042 = vpop.permute.xlu0 %2041
    %2043 = vrot.lane.b32.xlu0 %v524, 32
    %v2044 = vpop.permute.xlu0 %2043
    %2045 = vrot.lane.b32.xlu0 %v526, 32
    %v2046 = vpop.permute.xlu0 %2045
    %2047 = vrot.lane.b32.xlu0 %v529, 32
    %v2048 = vpop.permute.xlu0 %2047
    %2049 = vrot.lane.b32.xlu0 %v531, 32
    %v2050 = vpop.permute.xlu0 %2049
    %2051 = vrot.lane.b32.xlu0 %v534, 32
    %v2052 = vpop.permute.xlu0 %2051
    %2053 = vrot.lane.b32.xlu0 %v536, 32
    %v2054 = vpop.permute.xlu0 %2053
    %2055 = vrot.lane.b32.xlu0 %v539, 32
    %v2056 = vpop.permute.xlu0 %2055
    %2057 = vrot.lane.b32.xlu0 %v541, 32
    %v2058 = vpop.permute.xlu0 %2057
    %2059 = vrot.lane.b32.xlu0 %v544, 32
    %v2060 = vpop.permute.xlu0 %2059
    %2061 = vrot.lane.b32.xlu0 %v546, 32
    %v2062 = vpop.permute.xlu0 %2061
    %2063 = vrot.lane.b32.xlu0 %v570, 32
    %v2064 = vpop.permute.xlu0 %2063
    %2065 = vrot.lane.b32.xlu0 %v572, 32
    %v2066 = vpop.permute.xlu0 %2065
    %2067 = vrot.lane.b32.xlu0 %v596, 32
    %v2068 = vpop.permute.xlu0 %2067
    %2069 = vrot.lane.b32.xlu0 %v598, 32
    %v2070 = vpop.permute.xlu0 %2069
    %vm2135 = vcmask 31744
    %v2136 = vsel %vm2135, %v21, %v600
    %v2137 = vsel %vm2135, %v22, %v602
    %v2138 = vsel %vm2135, %v24, %v604
    %v2139 = vsel %vm2135, %v25, %v606
    %v2140 = vsel %vm2135, %v27, %v608
    %v2141 = vsel %vm2135, %v28, %v610
    %v2142 = vsel %vm2135, %v30, %v612
    %v2143 = vsel %vm2135, %v31, %v614
    %v2144 = vsel %vm2135, %v33, %v616
    %v2145 = vsel %vm2135, %v34, %v618
    %v2146 = vsel %vm2135, %v36, %v620
    %v2147 = vsel %vm2135, %v37, %v622
    %v2148 = vsel %vm2135, %v39, %v624
    %v2149 = vsel %vm2135, %v40, %v626
    %v2150 = vsel %vm2135, %v42, %v628
    %v2151 = vsel %vm2135, %v43, %v630
    %v2152 = vsel %vm2135, %v45, %v632
    %v2153 = vsel %vm2135, %v46, %v634
    %v2154 = vsel %vm2135, %v48, %v636
    %v2155 = vsel %vm2135, %v49, %v638
    %v2156 = vsel %vm2135, %v51, %v640
    %v2157 = vsel %vm2135, %v52, %v642
    %v2158 = vsel %vm2135, %v54, %v644
    %v2159 = vsel %vm2135, %v55, %v646
    %v2160 = vsel %vm2135, %v57, %v648
    %v2161 = vsel %vm2135, %v58, %v650
    %v2162 = vsel %vm2135, %v60, %v652
    %v2163 = vsel %vm2135, %v61, %v654
    %v2164 = vsel %vm2135, %v63, %v656
    %v2165 = vsel %vm2135, %v64, %v658
    %v2166 = vsel %vm2135, %v66, %v660
    %v2167 = vsel %vm2135, %v67, %v662
    %v2168 = vsel %vm2135, %v75, %v664
    %v2169 = vsel %vm2135, %v76, %v666
    %v2170 = vsel %vm2135, %v78, %v668
    %v2171 = vsel %vm2135, %v79, %v670
    %v2172 = vsel %vm2135, %v81, %v672
    %v2173 = vsel %vm2135, %v82, %v674
    %v2174 = vsel %vm2135, %v84, %v676
    %v2175 = vsel %vm2135, %v85, %v678
    %v2176 = vsel %vm2135, %v87, %v680
    %v2177 = vsel %vm2135, %v88, %v682
    %v2178 = vsel %vm2135, %v90, %v684
    %v2179 = vsel %vm2135, %v91, %v686
    %v2180 = vsel %vm2135, %v93, %v688
    %v2181 = vsel %vm2135, %v94, %v690
    %v2182 = vsel %vm2135, %v96, %v692
    %v2183 = vsel %vm2135, %v97, %v694
    %v2184 = vsel %vm2135, %v99, %v696
    %v2185 = vsel %vm2135, %v100, %v698
    %v2186 = vsel %vm2135, %v102, %v700
    %v2187 = vsel %vm2135, %v103, %v702
    %v2188 = vsel %vm2135, %v105, %v704
    %v2189 = vsel %vm2135, %v106, %v706
    %v2190 = vsel %vm2135, %v108, %v708
    %v2191 = vsel %vm2135, %v109, %v710
    %v2192 = vsel %vm2135, %v111, %v712
    %v2193 = vsel %vm2135, %v112, %v714
    %v2194 = vsel %vm2135, %v114, %v716
    %v2195 = vsel %vm2135, %v115, %v718
    %v2196 = vsel %vm2135, %v117, %v720
    %v2197 = vsel %vm2135, %v118, %v722
    %v2198 = vsel %vm2135, %v120, %v724
    %v2199 = vsel %vm2135, %v121, %v726
    %vm2200 = vcmask 64512
    %v2201 = vsel %vm2200, %v2136, %v792
    %v2202 = vsel %vm2200, %v2137, %v794
    %v2203 = vsel %vm2200, %v2138, %v796
    %v2204 = vsel %vm2200, %v2139, %v798
    %v2205 = vsel %vm2200, %v2140, %v800
    %v2206 = vsel %vm2200, %v2141, %v802
    %v2207 = vsel %vm2200, %v2142, %v804
    %v2208 = vsel %vm2200, %v2143, %v806
    %v2209 = vsel %vm2200, %v2144, %v808
    %v2210 = vsel %vm2200, %v2145, %v810
    %v2211 = vsel %vm2200, %v2146, %v812
    %v2212 = vsel %vm2200, %v2147, %v814
    %v2213 = vsel %vm2200, %v2148, %v816
    %v2214 = vsel %vm2200, %v2149, %v818
    %v2215 = vsel %vm2200, %v2150, %v820
    %v2216 = vsel %vm2200, %v2151, %v822
    %v2217 = vsel %vm2200, %v2152, %v824
    %v2218 = vsel %vm2200, %v2153, %v826
    %v2219 = vsel %vm2200, %v2154, %v828
    %v2220 = vsel %vm2200, %v2155, %v830
    %v2221 = vsel %vm2200, %v2156, %v832
    %v2222 = vsel %vm2200, %v2157, %v834
    %v2223 = vsel %vm2200, %v2158, %v836
    %v2224 = vsel %vm2200, %v2159, %v838
    %v2225 = vsel %vm2200, %v2160, %v840
    %v2226 = vsel %vm2200, %v2161, %v842
    %v2227 = vsel %vm2200, %v2162, %v844
    %v2228 = vsel %vm2200, %v2163, %v846
    %v2229 = vsel %vm2200, %v2164, %v848
    %v2230 = vsel %vm2200, %v2165, %v850
    %v2231 = vsel %vm2200, %v2166, %v852
    %v2232 = vsel %vm2200, %v2167, %v854
    %v2233 = vsel %vm2200, %v2168, %v856
    %v2234 = vsel %vm2200, %v2169, %v858
    %v2235 = vsel %vm2200, %v2170, %v860
    %v2236 = vsel %vm2200, %v2171, %v862
    %v2237 = vsel %vm2200, %v2172, %v864
    %v2238 = vsel %vm2200, %v2173, %v866
    %v2239 = vsel %vm2200, %v2174, %v868
    %v2240 = vsel %vm2200, %v2175, %v870
    %v2241 = vsel %vm2200, %v2176, %v872
    %v2242 = vsel %vm2200, %v2177, %v874
    %v2243 = vsel %vm2200, %v2178, %v876
    %v2244 = vsel %vm2200, %v2179, %v878
    %v2245 = vsel %vm2200, %v2180, %v880
    %v2246 = vsel %vm2200, %v2181, %v882
    %v2247 = vsel %vm2200, %v2182, %v884
    %v2248 = vsel %vm2200, %v2183, %v886
    %v2249 = vsel %vm2200, %v2184, %v888
    %v2250 = vsel %vm2200, %v2185, %v890
    %v2251 = vsel %vm2200, %v2186, %v892
    %v2252 = vsel %vm2200, %v2187, %v894
    %v2253 = vsel %vm2200, %v2188, %v896
    %v2254 = vsel %vm2200, %v2189, %v898
    %v2255 = vsel %vm2200, %v2190, %v900
    %v2256 = vsel %vm2200, %v2191, %v902
    %v2257 = vsel %vm2200, %v2192, %v904
    %v2258 = vsel %vm2200, %v2193, %v906
    %v2259 = vsel %vm2200, %v2194, %v908
    %v2260 = vsel %vm2200, %v2195, %v910
    %v2261 = vsel %vm2200, %v2196, %v912
    %v2262 = vsel %vm2200, %v2197, %v914
    %v2263 = vsel %vm2200, %v2198, %v916
    %v2264 = vsel %vm2200, %v2199, %v918
    %vm2265 = vcmask 97280
    %v2266 = vsel %vm2265, %v2201, %v984
    %v2267 = vsel %vm2265, %v2202, %v986
    %v2268 = vsel %vm2265, %v2203, %v988
    %v2269 = vsel %vm2265, %v2204, %v990
    %v2270 = vsel %vm2265, %v2205, %v992
    %v2271 = vsel %vm2265, %v2206, %v994
    %v2272 = vsel %vm2265, %v2207, %v996
    %v2273 = vsel %vm2265, %v2208, %v998
    %v2274 = vsel %vm2265, %v2209, %v1000
    %v2275 = vsel %vm2265, %v2210, %v1002
    %v2276 = vsel %vm2265, %v2211, %v1004
    %v2277 = vsel %vm2265, %v2212, %v1006
    %v2278 = vsel %vm2265, %v2213, %v1008
    %v2279 = vsel %vm2265, %v2214, %v1010
    %v2280 = vsel %vm2265, %v2215, %v1012
    %v2281 = vsel %vm2265, %v2216, %v1014
    %v2282 = vsel %vm2265, %v2217, %v1016
    %v2283 = vsel %vm2265, %v2218, %v1018
    %v2284 = vsel %vm2265, %v2219, %v1020
    %v2285 = vsel %vm2265, %v2220, %v1022
    %v2286 = vsel %vm2265, %v2221, %v1024
    %v2287 = vsel %vm2265, %v2222, %v1026
    %v2288 = vsel %vm2265, %v2223, %v1028
    %v2289 = vsel %vm2265, %v2224, %v1030
    %v2290 = vsel %vm2265, %v2225, %v1032
    %v2291 = vsel %vm2265, %v2226, %v1034
    %v2292 = vsel %vm2265, %v2227, %v1036
    %v2293 = vsel %vm2265, %v2228, %v1038
    %v2294 = vsel %vm2265, %v2229, %v1040
    %v2295 = vsel %vm2265, %v2230, %v1042
    %v2296 = vsel %vm2265, %v2231, %v1044
    %v2297 = vsel %vm2265, %v2232, %v1046
    %v2298 = vsel %vm2265, %v2233, %v1048
    %v2299 = vsel %vm2265, %v2234, %v1050
    %v2300 = vsel %vm2265, %v2235, %v1052
    %v2301 = vsel %vm2265, %v2236, %v1054
    %v2302 = vsel %vm2265, %v2237, %v1056
    %v2303 = vsel %vm2265, %v2238, %v1058
    %v2304 = vsel %vm2265, %v2239, %v1060
    %v2305 = vsel %vm2265, %v2240, %v1062
    %v2306 = vsel %vm2265, %v2241, %v1064
    %v2307 = vsel %vm2265, %v2242, %v1066
    %v2308 = vsel %vm2265, %v2243, %v1068
    %v2309 = vsel %vm2265, %v2244, %v1070
    %v2310 = vsel %vm2265, %v2245, %v1072
    %v2311 = vsel %vm2265, %v2246, %v1074
    %v2312 = vsel %vm2265, %v2247, %v1076
    %v2313 = vsel %vm2265, %v2248, %v1078
    %v2314 = vsel %vm2265, %v2249, %v1080
    %v2315 = vsel %vm2265, %v2250, %v1082
    %v2316 = vsel %vm2265, %v2251, %v1084
    %v2317 = vsel %vm2265, %v2252, %v1086
    %v2318 = vsel %vm2265, %v2253, %v1088
    %v2319 = vsel %vm2265, %v2254, %v1090
    %v2320 = vsel %vm2265, %v2255, %v1092
    %v2321 = vsel %vm2265, %v2256, %v1094
    %v2322 = vsel %vm2265, %v2257, %v1096
    %v2323 = vsel %vm2265, %v2258, %v1098
    %v2324 = vsel %vm2265, %v2259, %v1100
    %v2325 = vsel %vm2265, %v2260, %v1102
    %v2326 = vsel %vm2265, %v2261, %v1104
    %v2327 = vsel %vm2265, %v2262, %v1106
    %v2328 = vsel %vm2265, %v2263, %v1108
    %v2329 = vsel %vm2265, %v2264, %v1110
    %vm2330 = vcmask 130048
    %v2331 = vsel %vm2330, %v2266, %v1176
    %v2332 = vsel %vm2330, %v2267, %v1178
    %v2333 = vsel %vm2330, %v2268, %v1180
    %v2334 = vsel %vm2330, %v2269, %v1182
    %v2335 = vsel %vm2330, %v2270, %v1184
    %v2336 = vsel %vm2330, %v2271, %v1186
    %v2337 = vsel %vm2330, %v2272, %v1188
    %v2338 = vsel %vm2330, %v2273, %v1190
    %v2339 = vsel %vm2330, %v2274, %v1192
    %v2340 = vsel %vm2330, %v2275, %v1194
    %v2341 = vsel %vm2330, %v2276, %v1196
    %v2342 = vsel %vm2330, %v2277, %v1198
    %v2343 = vsel %vm2330, %v2278, %v1200
    %v2344 = vsel %vm2330, %v2279, %v1202
    %v2345 = vsel %vm2330, %v2280, %v1204
    %v2346 = vsel %vm2330, %v2281, %v1206
    %v2347 = vsel %vm2330, %v2282, %v1208
    %v2348 = vsel %vm2330, %v2283, %v1210
    %v2349 = vsel %vm2330, %v2284, %v1212
    %v2350 = vsel %vm2330, %v2285, %v1214
    %v2351 = vsel %vm2330, %v2286, %v1216
    %v2352 = vsel %vm2330, %v2287, %v1218
    %v2353 = vsel %vm2330, %v2288, %v1220
    %v2354 = vsel %vm2330, %v2289, %v1222
    %v2355 = vsel %vm2330, %v2290, %v1224
    %v2356 = vsel %vm2330, %v2291, %v1226
    %v2357 = vsel %vm2330, %v2292, %v1228
    %v2358 = vsel %vm2330, %v2293, %v1230
    %v2359 = vsel %vm2330, %v2294, %v1232
    %v2360 = vsel %vm2330, %v2295, %v1234
    %v2361 = vsel %vm2330, %v2296, %v1236
    %v2362 = vsel %vm2330, %v2297, %v1238
    %v2363 = vsel %vm2330, %v2298, %v1240
    %v2364 = vsel %vm2330, %v2299, %v1242
    %v2365 = vsel %vm2330, %v2300, %v1244
    %v2366 = vsel %vm2330, %v2301, %v1246
    %v2367 = vsel %vm2330, %v2302, %v1248
    %v2368 = vsel %vm2330, %v2303, %v1250
    %v2369 = vsel %vm2330, %v2304, %v1252
    %v2370 = vsel %vm2330, %v2305, %v1254
    %v2371 = vsel %vm2330, %v2306, %v1256
    %v2372 = vsel %vm2330, %v2307, %v1258
    %v2373 = vsel %vm2330, %v2308, %v1260
    %v2374 = vsel %vm2330, %v2309, %v1262
    %v2375 = vsel %vm2330, %v2310, %v1264
    %v2376 = vsel %vm2330, %v2311, %v1266
    %v2377 = vsel %vm2330, %v2312, %v1268
    %v2378 = vsel %vm2330, %v2313, %v1270
    %v2379 = vsel %vm2330, %v2314, %v1272
    %v2380 = vsel %vm2330, %v2315, %v1274
    %v2381 = vsel %vm2330, %v2316, %v1276
    %v2382 = vsel %vm2330, %v2317, %v1278
    %v2383 = vsel %vm2330, %v2318, %v1280
    %v2384 = vsel %vm2330, %v2319, %v1282
    %v2385 = vsel %vm2330, %v2320, %v1284
    %v2386 = vsel %vm2330, %v2321, %v1286
    %v2387 = vsel %vm2330, %v2322, %v1288
    %v2388 = vsel %vm2330, %v2323, %v1290
    %v2389 = vsel %vm2330, %v2324, %v1292
    %v2390 = vsel %vm2330, %v2325, %v1294
    %v2391 = vsel %vm2330, %v2326, %v1296
    %v2392 = vsel %vm2330, %v2327, %v1298
    %v2393 = vsel %vm2330, %v2328, %v1300
    %v2394 = vsel %vm2330, %v2329, %v1302
    %vm2395 = vcmask 162816
    %v2396 = vsel %vm2395, %v2331, %v1368
    %v2397 = vsel %vm2395, %v2332, %v1370
    %v2398 = vsel %vm2395, %v2333, %v1372
    %v2399 = vsel %vm2395, %v2334, %v1374
    %v2400 = vsel %vm2395, %v2335, %v1376
    %v2401 = vsel %vm2395, %v2336, %v1378
    %v2402 = vsel %vm2395, %v2337, %v1380
    %v2403 = vsel %vm2395, %v2338, %v1382
    %v2404 = vsel %vm2395, %v2339, %v1384
    %v2405 = vsel %vm2395, %v2340, %v1386
    %v2406 = vsel %vm2395, %v2341, %v1388
    %v2407 = vsel %vm2395, %v2342, %v1390
    %v2408 = vsel %vm2395, %v2343, %v1392
    %v2409 = vsel %vm2395, %v2344, %v1394
    %v2410 = vsel %vm2395, %v2345, %v1396
    %v2411 = vsel %vm2395, %v2346, %v1398
    %v2412 = vsel %vm2395, %v2347, %v1400
    %v2413 = vsel %vm2395, %v2348, %v1402
    %v2414 = vsel %vm2395, %v2349, %v1404
    %v2415 = vsel %vm2395, %v2350, %v1406
    %v2416 = vsel %vm2395, %v2351, %v1408
    %v2417 = vsel %vm2395, %v2352, %v1410
    %v2418 = vsel %vm2395, %v2353, %v1412
    %v2419 = vsel %vm2395, %v2354, %v1414
    %v2420 = vsel %vm2395, %v2355, %v1416
    %v2421 = vsel %vm2395, %v2356, %v1418
    %v2422 = vsel %vm2395, %v2357, %v1420
    %v2423 = vsel %vm2395, %v2358, %v1422
    %v2424 = vsel %vm2395, %v2359, %v1424
    %v2425 = vsel %vm2395, %v2360, %v1426
    %v2426 = vsel %vm2395, %v2361, %v1428
    %v2427 = vsel %vm2395, %v2362, %v1430
    %v2428 = vsel %vm2395, %v2363, %v1432
    %v2429 = vsel %vm2395, %v2364, %v1434
    %v2430 = vsel %vm2395, %v2365, %v1436
    %v2431 = vsel %vm2395, %v2366, %v1438
    %v2432 = vsel %vm2395, %v2367, %v1440
    %v2433 = vsel %vm2395, %v2368, %v1442
    %v2434 = vsel %vm2395, %v2369, %v1444
    %v2435 = vsel %vm2395, %v2370, %v1446
    %v2436 = vsel %vm2395, %v2371, %v1448
    %v2437 = vsel %vm2395, %v2372, %v1450
    %v2438 = vsel %vm2395, %v2373, %v1452
    %v2439 = vsel %vm2395, %v2374, %v1454
    %v2440 = vsel %vm2395, %v2375, %v1456
    %v2441 = vsel %vm2395, %v2376, %v1458
    %v2442 = vsel %vm2395, %v2377, %v1460
    %v2443 = vsel %vm2395, %v2378, %v1462
    %v2444 = vsel %vm2395, %v2379, %v1464
    %v2445 = vsel %vm2395, %v2380, %v1466
    %v2446 = vsel %vm2395, %v2381, %v1468
    %v2447 = vsel %vm2395, %v2382, %v1470
    %v2448 = vsel %vm2395, %v2383, %v1472
    %v2449 = vsel %vm2395, %v2384, %v1474
    %v2450 = vsel %vm2395, %v2385, %v1476
    %v2451 = vsel %vm2395, %v2386, %v1478
    %v2452 = vsel %vm2395, %v2387, %v1480
    %v2453 = vsel %vm2395, %v2388, %v1482
    %v2454 = vsel %vm2395, %v2389, %v1484
    %v2455 = vsel %vm2395, %v2390, %v1486
    %v2456 = vsel %vm2395, %v2391, %v1488
    %v2457 = vsel %vm2395, %v2392, %v1490
    %v2458 = vsel %vm2395, %v2393, %v1492
    %v2459 = vsel %vm2395, %v2394, %v1494
    %vm2460 = vcmask 195584
    %v2461 = vsel %vm2460, %v2396, %v1560
    %v2462 = vsel %vm2460, %v2397, %v1562
    %v2463 = vsel %vm2460, %v2398, %v1564
    %v2464 = vsel %vm2460, %v2399, %v1566
    %v2465 = vsel %vm2460, %v2400, %v1568
    %v2466 = vsel %vm2460, %v2401, %v1570
    %v2467 = vsel %vm2460, %v2402, %v1572
    %v2468 = vsel %vm2460, %v2403, %v1574
    %v2469 = vsel %vm2460, %v2404, %v1576
    %v2470 = vsel %vm2460, %v2405, %v1578
    %v2471 = vsel %vm2460, %v2406, %v1580
    %v2472 = vsel %vm2460, %v2407, %v1582
    %v2473 = vsel %vm2460, %v2408, %v1584
    %v2474 = vsel %vm2460, %v2409, %v1586
    %v2475 = vsel %vm2460, %v2410, %v1588
    %v2476 = vsel %vm2460, %v2411, %v1590
    %v2477 = vsel %vm2460, %v2412, %v1592
    %v2478 = vsel %vm2460, %v2413, %v1594
    %v2479 = vsel %vm2460, %v2414, %v1596
    %v2480 = vsel %vm2460, %v2415, %v1598
    %v2481 = vsel %vm2460, %v2416, %v1600
    %v2482 = vsel %vm2460, %v2417, %v1602
    %v2483 = vsel %vm2460, %v2418, %v1604
    %v2484 = vsel %vm2460, %v2419, %v1606
    %v2485 = vsel %vm2460, %v2420, %v1608
    %v2486 = vsel %vm2460, %v2421, %v1610
    %v2487 = vsel %vm2460, %v2422, %v1612
    %v2488 = vsel %vm2460, %v2423, %v1614
    %v2489 = vsel %vm2460, %v2424, %v1616
    %v2490 = vsel %vm2460, %v2425, %v1618
    %v2491 = vsel %vm2460, %v2426, %v1620
    %v2492 = vsel %vm2460, %v2427, %v1622
    %v2493 = vsel %vm2460, %v2428, %v1624
    %v2494 = vsel %vm2460, %v2429, %v1626
    %v2495 = vsel %vm2460, %v2430, %v1628
    %v2496 = vsel %vm2460, %v2431, %v1630
    %v2497 = vsel %vm2460, %v2432, %v1632
    %v2498 = vsel %vm2460, %v2433, %v1634
    %v2499 = vsel %vm2460, %v2434, %v1636
    %v2500 = vsel %vm2460, %v2435, %v1638
    %v2501 = vsel %vm2460, %v2436, %v1640
    %v2502 = vsel %vm2460, %v2437, %v1642
    %v2503 = vsel %vm2460, %v2438, %v1644
    %v2504 = vsel %vm2460, %v2439, %v1646
    %v2505 = vsel %vm2460, %v2440, %v1648
    %v2506 = vsel %vm2460, %v2441, %v1650
    %v2507 = vsel %vm2460, %v2442, %v1652
    %v2508 = vsel %vm2460, %v2443, %v1654
    %v2509 = vsel %vm2460, %v2444, %v1656
    %v2510 = vsel %vm2460, %v2445, %v1658
    %v2511 = vsel %vm2460, %v2446, %v1660
    %v2512 = vsel %vm2460, %v2447, %v1662
    %v2513 = vsel %vm2460, %v2448, %v1664
    %v2514 = vsel %vm2460, %v2449, %v1666
    %v2515 = vsel %vm2460, %v2450, %v1668
    %v2516 = vsel %vm2460, %v2451, %v1670
    %v2517 = vsel %vm2460, %v2452, %v1672
    %v2518 = vsel %vm2460, %v2453, %v1674
    %v2519 = vsel %vm2460, %v2454, %v1676
    %v2520 = vsel %vm2460, %v2455, %v1678
    %v2521 = vsel %vm2460, %v2456, %v1680
    %v2522 = vsel %vm2460, %v2457, %v1682
    %v2523 = vsel %vm2460, %v2458, %v1684
    %v2524 = vsel %vm2460, %v2459, %v1686
    %vm2525 = vcmask 228352
    %v2526 = vsel %vm2525, %v2461, %v1752
    %v2527 = vsel %vm2525, %v2462, %v1754
    %v2528 = vsel %vm2525, %v2463, %v1756
    %v2529 = vsel %vm2525, %v2464, %v1758
    %v2530 = vsel %vm2525, %v2465, %v1760
    %v2531 = vsel %vm2525, %v2466, %v1762
    %v2532 = vsel %vm2525, %v2467, %v1764
    %v2533 = vsel %vm2525, %v2468, %v1766
    %v2534 = vsel %vm2525, %v2469, %v1768
    %v2535 = vsel %vm2525, %v2470, %v1770
    %v2536 = vsel %vm2525, %v2471, %v1772
    %v2537 = vsel %vm2525, %v2472, %v1774
    %v2538 = vsel %vm2525, %v2473, %v1776
    %v2539 = vsel %vm2525, %v2474, %v1778
    %v2540 = vsel %vm2525, %v2475, %v1780
    %v2541 = vsel %vm2525, %v2476, %v1782
    %v2542 = vsel %vm2525, %v2477, %v1784
    %v2543 = vsel %vm2525, %v2478, %v1786
    %v2544 = vsel %vm2525, %v2479, %v1788
    %v2545 = vsel %vm2525, %v2480, %v1790
    %v2546 = vsel %vm2525, %v2481, %v1792
    %v2547 = vsel %vm2525, %v2482, %v1794
    %v2548 = vsel %vm2525, %v2483, %v1796
    %v2549 = vsel %vm2525, %v2484, %v1798
    %v2550 = vsel %vm2525, %v2485, %v1800
    %v2551 = vsel %vm2525, %v2486, %v1802
    %v2552 = vsel %vm2525, %v2487, %v1804
    %v2553 = vsel %vm2525, %v2488, %v1806
    %v2554 = vsel %vm2525, %v2489, %v1808
    %v2555 = vsel %vm2525, %v2490, %v1810
    %v2556 = vsel %vm2525, %v2491, %v1812
    %v2557 = vsel %vm2525, %v2492, %v1814
    %v2558 = vsel %vm2525, %v2493, %v1816
    %v2559 = vsel %vm2525, %v2494, %v1818
    %v2560 = vsel %vm2525, %v2495, %v1820
    %v2561 = vsel %vm2525, %v2496, %v1822
    %v2562 = vsel %vm2525, %v2497, %v1824
    %v2563 = vsel %vm2525, %v2498, %v1826
    %v2564 = vsel %vm2525, %v2499, %v1828
    %v2565 = vsel %vm2525, %v2500, %v1830
    %v2566 = vsel %vm2525, %v2501, %v1832
    %v2567 = vsel %vm2525, %v2502, %v1834
    %v2568 = vsel %vm2525, %v2503, %v1836
    %v2569 = vsel %vm2525, %v2504, %v1838
    %v2570 = vsel %vm2525, %v2505, %v1840
    %v2571 = vsel %vm2525, %v2506, %v1842
    %v2572 = vsel %vm2525, %v2507, %v1844
    %v2573 = vsel %vm2525, %v2508, %v1846
    %v2574 = vsel %vm2525, %v2509, %v1848
    %v2575 = vsel %vm2525, %v2510, %v1850
    %v2576 = vsel %vm2525, %v2511, %v1852
    %v2577 = vsel %vm2525, %v2512, %v1854
    %v2578 = vsel %vm2525, %v2513, %v1856
    %v2579 = vsel %vm2525, %v2514, %v1858
    %v2580 = vsel %vm2525, %v2515, %v1860
    %v2581 = vsel %vm2525, %v2516, %v1862
    %v2582 = vsel %vm2525, %v2517, %v1864
    %v2583 = vsel %vm2525, %v2518, %v1866
    %v2584 = vsel %vm2525, %v2519, %v1868
    %v2585 = vsel %vm2525, %v2520, %v1870
    %v2586 = vsel %vm2525, %v2521, %v1872
    %v2587 = vsel %vm2525, %v2522, %v1874
    %v2588 = vsel %vm2525, %v2523, %v1876
    %v2589 = vsel %vm2525, %v2524, %v1878
    %vm2590 = vcmask 261120
    %v2591 = vsel %vm2590, %v2526, %v1944
    %v2592 = vsel %vm2590, %v2527, %v1946
    %v2593 = vsel %vm2590, %v2528, %v1948
    %v2594 = vsel %vm2590, %v2529, %v1950
    %v2595 = vsel %vm2590, %v2530, %v1952
    %v2596 = vsel %vm2590, %v2531, %v1954
    %v2597 = vsel %vm2590, %v2532, %v1956
    %v2598 = vsel %vm2590, %v2533, %v1958
    %v2599 = vsel %vm2590, %v2534, %v1960
    %v2600 = vsel %vm2590, %v2535, %v1962
    %v2601 = vsel %vm2590, %v2536, %v1964
    %v2602 = vsel %vm2590, %v2537, %v1966
    %v2603 = vsel %vm2590, %v2538, %v1968
    %v2604 = vsel %vm2590, %v2539, %v1970
    %v2605 = vsel %vm2590, %v2540, %v1972
    %v2606 = vsel %vm2590, %v2541, %v1974
    %v2607 = vsel %vm2590, %v2542, %v1976
    %v2608 = vsel %vm2590, %v2543, %v1978
    %v2609 = vsel %vm2590, %v2544, %v1980
    %v2610 = vsel %vm2590, %v2545, %v1982
    %v2611 = vsel %vm2590, %v2546, %v1984
    %v2612 = vsel %vm2590, %v2547, %v1986
    %v2613 = vsel %vm2590, %v2548, %v1988
    %v2614 = vsel %vm2590, %v2549, %v1990
    %v2615 = vsel %vm2590, %v2550, %v1992
    %v2616 = vsel %vm2590, %v2551, %v1994
    %v2617 = vsel %vm2590, %v2552, %v1996
    %v2618 = vsel %vm2590, %v2553, %v1998
    %v2619 = vsel %vm2590, %v2554, %v2000
    %v2620 = vsel %vm2590, %v2555, %v2002
    %v2621 = vsel %vm2590, %v2556, %v2004
    %v2622 = vsel %vm2590, %v2557, %v2006
    %v2623 = vsel %vm2590, %v2558, %v2008
    %v2624 = vsel %vm2590, %v2559, %v2010
    %v2625 = vsel %vm2590, %v2560, %v2012
    %v2626 = vsel %vm2590, %v2561, %v2014
    %v2627 = vsel %vm2590, %v2562, %v2016
    %v2628 = vsel %vm2590, %v2563, %v2018
    %v2629 = vsel %vm2590, %v2564, %v2020
    %v2630 = vsel %vm2590, %v2565, %v2022
    %v2631 = vsel %vm2590, %v2566, %v2024
    %v2632 = vsel %vm2590, %v2567, %v2026
    %v2633 = vsel %vm2590, %v2568, %v2028
    %v2634 = vsel %vm2590, %v2569, %v2030
    %v2635 = vsel %vm2590, %v2570, %v2032
    %v2636 = vsel %vm2590, %v2571, %v2034
    %v2637 = vsel %vm2590, %v2572, %v2036
    %v2638 = vsel %vm2590, %v2573, %v2038
    %v2639 = vsel %vm2590, %v2574, %v2040
    %v2640 = vsel %vm2590, %v2575, %v2042
    %v2641 = vsel %vm2590, %v2576, %v2044
    %v2642 = vsel %vm2590, %v2577, %v2046
    %v2643 = vsel %vm2590, %v2578, %v2048
    %v2644 = vsel %vm2590, %v2579, %v2050
    %v2645 = vsel %vm2590, %v2580, %v2052
    %v2646 = vsel %vm2590, %v2581, %v2054
    %v2647 = vsel %vm2590, %v2582, %v2056
    %v2648 = vsel %vm2590, %v2583, %v2058
    %v2649 = vsel %vm2590, %v2584, %v2060
    %v2650 = vsel %vm2590, %v2585, %v2062
    %v2651 = vsel %vm2590, %v2586, %v2064
    %v2652 = vsel %vm2590, %v2587, %v2066
    %v2653 = vsel %vm2590, %v2588, %v2068
    %v2654 = vsel %vm2590, %v2589, %v2070
    %v2655 = vld [vmem:[%s1] sm:$0xff]
    %v2656 = vld [vmem:[%s1 + $0x8] sm:$0xff]
    %v2657 = vld [vmem:[%s1 + $0x10] sm:$0xff]
    %v2658 = vld [vmem:[%s1 + $0x18] sm:$0xff]
    %v2659 = vld [vmem:[%s1 + $0x20] sm:$0xf]
    %vm2660 = vcmask 293888
    %v2662 = vsel %vm2660, %v2591, 0
    %v2665 = vsel %vm2660, %v2592, 0
    %v2668 = vsel %vm2660, %v2593, 0
    %v2671 = vsel %vm2660, %v2594, 0
    %v2674 = vsel %vm2660, %v2595, 0
    %v2677 = vsel %vm2660, %v2596, 0
    %v2680 = vsel %vm2660, %v2597, 0
    %v2683 = vsel %vm2660, %v2598, 0
    %v2686 = vsel %vm2660, %v2599, 0
    %v2689 = vsel %vm2660, %v2600, 0
    %v2692 = vsel %vm2660, %v2601, 0
    %v2695 = vsel %vm2660, %v2602, 0
    %v2698 = vsel %vm2660, %v2603, 0
    %v2701 = vsel %vm2660, %v2604, 0
    %v2704 = vsel %vm2660, %v2605, 0
    %v2707 = vsel %vm2660, %v2606, 0
    %v2710 = vsel %vm2660, %v2607, 0
    %v2713 = vsel %vm2660, %v2608, 0
    %v2716 = vsel %vm2660, %v2609, 0
    %v2719 = vsel %vm2660, %v2610, 0
    %v2722 = vsel %vm2660, %v2611, 0
    %v2725 = vsel %vm2660, %v2612, 0
    %v2728 = vsel %vm2660, %v2613, 0
    %v2731 = vsel %vm2660, %v2614, 0
    %v2734 = vsel %vm2660, %v2615, 0
    %v2737 = vsel %vm2660, %v2616, 0
    %v2740 = vsel %vm2660, %v2617, 0
    %v2743 = vsel %vm2660, %v2618, 0
    %v2746 = vsel %vm2660, %v2619, 0
    %v2749 = vsel %vm2660, %v2620, 0
    %v2752 = vsel %vm2660, %v2621, 0
    %v2755 = vsel %vm2660, %v2622, 0
    %v2758 = vsel %vm2660, %v2623, 0
    %v2761 = vsel %vm2660, %v2624, 0
    %v2764 = vsel %vm2660, %v2625, 0
    %v2767 = vsel %vm2660, %v2626, 0
    %v2770 = vsel %vm2660, %v2627, 0
    %v2773 = vsel %vm2660, %v2628, 0
    %v2776 = vsel %vm2660, %v2629, 0
    %v2779 = vsel %vm2660, %v2630, 0
    %v2782 = vsel %vm2660, %v2631, 0
    %v2785 = vsel %vm2660, %v2632, 0
    %v2788 = vsel %vm2660, %v2633, 0
    %v2791 = vsel %vm2660, %v2634, 0
    %v2794 = vsel %vm2660, %v2635, 0
    %v2797 = vsel %vm2660, %v2636, 0
    %v2800 = vsel %vm2660, %v2637, 0
    %v2803 = vsel %vm2660, %v2638, 0
    %v2806 = vsel %vm2660, %v2639, 0
    %v2809 = vsel %vm2660, %v2640, 0
    %v2812 = vsel %vm2660, %v2641, 0
    %v2815 = vsel %vm2660, %v2642, 0
    %v2818 = vsel %vm2660, %v2643, 0
    %v2821 = vsel %vm2660, %v2644, 0
    %v2824 = vsel %vm2660, %v2645, 0
    %v2827 = vsel %vm2660, %v2646, 0
    %v2830 = vsel %vm2660, %v2647, 0
    %v2833 = vsel %vm2660, %v2648, 0
    %v2836 = vsel %vm2660, %v2649, 0
    %v2839 = vsel %vm2660, %v2650, 0
    %v2842 = vsel %vm2660, %v2651, 0
    %v2845 = vsel %vm2660, %v2652, 0
    %v2848 = vsel %vm2660, %v2653, 0
    %v2851 = vsel %vm2660, %v2654, 0
    %vm2853 = vcmask 1043456
    %v2855 = vsel %vm2853, %v2659, 0
    %2857 = vmatpush.msra.mxu0 0.0
    %2858 = vmatpush.msra.mxu0 0.0
    %2859 = vmatpush.msra.mxu0 0.0
    %2860 = vmatpush.msra.mxu0 0.0
    %2861 = vmatpush.msra.mxu0 0.0
    %2862 = vmatpush.msra.mxu0 0.0
    %2863 = vmatpush.msra.mxu0 0.0
    %2864 = vmatpush.msra.mxu0 0.0
    %2865 = vmatpush.msra.mxu0 0.0
    %2866 = vmatpush.msra.mxu0 0.0
    %2867 = vmatpush.msra.mxu0 0.0
    %2868 = vmatpush.msra.mxu0 %v2855
    %2869 = vmatpush.msra.mxu0 %v2658
    %2870 = vmatpush.msra.mxu0 %v2657
    %2871 = vmatpush.msra.mxu0 %v2656
    %2872 = vmatpush.msra.mxu0 %v2655
    %2873 = vmatmul.f32.gmra.mxu0 %v2662
    %v2874 = vpop.f32.mrf.mxu0
    %v2875 = vadd.f32 0.0, %v2874
    %2876 = vmatmul.f32.gmra.mxu0 %v2665
    %v2877 = vpop.f32.mrf.mxu0
    %v2878 = vadd.f32 0.0, %v2877
    %2879 = vmatmul.f32.gmra.mxu0 %v2668
    %v2880 = vpop.f32.mrf.mxu0
    %v2881 = vadd.f32 0.0, %v2880
    %2882 = vmatmul.f32.gmra.mxu0 %v2671
    %v2883 = vpop.f32.mrf.mxu0
    %v2884 = vadd.f32 0.0, %v2883
    %2885 = vmatmul.f32.gmra.mxu0 %v2674
    %v2886 = vpop.f32.mrf.mxu0
    %v2887 = vadd.f32 0.0, %v2886
    %2888 = vmatmul.f32.gmra.mxu0 %v2677
    %v2889 = vpop.f32.mrf.mxu0
    %v2890 = vadd.f32 0.0, %v2889
    %2891 = vmatmul.f32.gmra.mxu0 %v2680
    %v2892 = vpop.f32.mrf.mxu0
    %v2893 = vadd.f32 0.0, %v2892
    %2894 = vmatmul.f32.gmra.mxu0 %v2683
    %v2895 = vpop.f32.mrf.mxu0
    %v2896 = vadd.f32 0.0, %v2895
    %2897 = vmatmul.f32.gmra.mxu0 %v2686
    %v2898 = vpop.f32.mrf.mxu0
    %v2899 = vadd.f32 0.0, %v2898
    %2900 = vmatmul.f32.gmra.mxu0 %v2689
    %v2901 = vpop.f32.mrf.mxu0
    %v2902 = vadd.f32 0.0, %v2901
    %2903 = vmatmul.f32.gmra.mxu0 %v2692
    %v2904 = vpop.f32.mrf.mxu0
    %v2905 = vadd.f32 0.0, %v2904
    %2906 = vmatmul.f32.gmra.mxu0 %v2695
    %v2907 = vpop.f32.mrf.mxu0
    %v2908 = vadd.f32 0.0, %v2907
    %2909 = vmatmul.f32.gmra.mxu0 %v2698
    %v2910 = vpop.f32.mrf.mxu0
    %v2911 = vadd.f32 0.0, %v2910
    %2912 = vmatmul.f32.gmra.mxu0 %v2701
    %v2913 = vpop.f32.mrf.mxu0
    %v2914 = vadd.f32 0.0, %v2913
    %2915 = vmatmul.f32.gmra.mxu0 %v2704
    %v2916 = vpop.f32.mrf.mxu0
    %v2917 = vadd.f32 0.0, %v2916
    %2918 = vmatmul.f32.gmra.mxu0 %v2707
    %v2919 = vpop.f32.mrf.mxu0
    %v2920 = vadd.f32 0.0, %v2919
    %2921 = vmatmul.f32.gmra.mxu0 %v2710
    %v2922 = vpop.f32.mrf.mxu0
    %v2923 = vadd.f32 0.0, %v2922
    %2924 = vmatmul.f32.gmra.mxu0 %v2713
    %v2925 = vpop.f32.mrf.mxu0
    %v2926 = vadd.f32 0.0, %v2925
    %2927 = vmatmul.f32.gmra.mxu0 %v2716
    %v2928 = vpop.f32.mrf.mxu0
    %v2929 = vadd.f32 0.0, %v2928
    %2930 = vmatmul.f32.gmra.mxu0 %v2719
    %v2931 = vpop.f32.mrf.mxu0
    %v2932 = vadd.f32 0.0, %v2931
    %2933 = vmatmul.f32.gmra.mxu0 %v2722
    %v2934 = vpop.f32.mrf.mxu0
    %v2935 = vadd.f32 0.0, %v2934
    %2936 = vmatmul.f32.gmra.mxu0 %v2725
    %v2937 = vpop.f32.mrf.mxu0
    %v2938 = vadd.f32 0.0, %v2937
    %2939 = vmatmul.f32.gmra.mxu0 %v2728
    %v2940 = vpop.f32.mrf.mxu0
    %v2941 = vadd.f32 0.0, %v2940
    %2942 = vmatmul.f32.gmra.mxu0 %v2731
    %v2943 = vpop.f32.mrf.mxu0
    %v2944 = vadd.f32 0.0, %v2943
    %2945 = vmatmul.f32.gmra.mxu0 %v2734
    %v2946 = vpop.f32.mrf.mxu0
    %v2947 = vadd.f32 0.0, %v2946
    %2948 = vmatmul.f32.gmra.mxu0 %v2737
    %v2949 = vpop.f32.mrf.mxu0
    %v2950 = vadd.f32 0.0, %v2949
    %2951 = vmatmul.f32.gmra.mxu0 %v2740
    %v2952 = vpop.f32.mrf.mxu0
    %v2953 = vadd.f32 0.0, %v2952
    %2954 = vmatmul.f32.gmra.mxu0 %v2743
    %v2955 = vpop.f32.mrf.mxu0
    %v2956 = vadd.f32 0.0, %v2955
    %2957 = vmatmul.f32.gmra.mxu0 %v2746
    %v2958 = vpop.f32.mrf.mxu0
    %v2959 = vadd.f32 0.0, %v2958
    %2960 = vmatmul.f32.gmra.mxu0 %v2749
    %v2961 = vpop.f32.mrf.mxu0
    %v2962 = vadd.f32 0.0, %v2961
    %2963 = vmatmul.f32.gmra.mxu0 %v2752
    %v2964 = vpop.f32.mrf.mxu0
    %v2965 = vadd.f32 0.0, %v2964
    %2966 = vmatmul.f32.gmra.mxu0 %v2755
    %v2967 = vpop.f32.mrf.mxu0
    %v2968 = vadd.f32 0.0, %v2967
    %2969 = vmatmul.f32.gmra.mxu0 %v2758
    %v2970 = vpop.f32.mrf.mxu0
    %v2971 = vadd.f32 0.0, %v2970
    %2972 = vmatmul.f32.gmra.mxu0 %v2761
    %v2973 = vpop.f32.mrf.mxu0
    %v2974 = vadd.f32 0.0, %v2973
    %2975 = vmatmul.f32.gmra.mxu0 %v2764
    %v2976 = vpop.f32.mrf.mxu0
    %v2977 = vadd.f32 0.0, %v2976
    %2978 = vmatmul.f32.gmra.mxu0 %v2767
    %v2979 = vpop.f32.mrf.mxu0
    %v2980 = vadd.f32 0.0, %v2979
    %2981 = vmatmul.f32.gmra.mxu0 %v2770
    %v2982 = vpop.f32.mrf.mxu0
    %v2983 = vadd.f32 0.0, %v2982
    %2984 = vmatmul.f32.gmra.mxu0 %v2773
    %v2985 = vpop.f32.mrf.mxu0
    %v2986 = vadd.f32 0.0, %v2985
    %2987 = vmatmul.f32.gmra.mxu0 %v2776
    %v2988 = vpop.f32.mrf.mxu0
    %v2989 = vadd.f32 0.0, %v2988
    %2990 = vmatmul.f32.gmra.mxu0 %v2779
    %v2991 = vpop.f32.mrf.mxu0
    %v2992 = vadd.f32 0.0, %v2991
    %2993 = vmatmul.f32.gmra.mxu0 %v2782
    %v2994 = vpop.f32.mrf.mxu0
    %v2995 = vadd.f32 0.0, %v2994
    %2996 = vmatmul.f32.gmra.mxu0 %v2785
    %v2997 = vpop.f32.mrf.mxu0
    %v2998 = vadd.f32 0.0, %v2997
    %2999 = vmatmul.f32.gmra.mxu0 %v2788
    %v3000 = vpop.f32.mrf.mxu0
    %v3001 = vadd.f32 0.0, %v3000
    %3002 = vmatmul.f32.gmra.mxu0 %v2791
    %v3003 = vpop.f32.mrf.mxu0
    %v3004 = vadd.f32 0.0, %v3003
    %3005 = vmatmul.f32.gmra.mxu0 %v2794
    %v3006 = vpop.f32.mrf.mxu0
    %v3007 = vadd.f32 0.0, %v3006
    %3008 = vmatmul.f32.gmra.mxu0 %v2797
    %v3009 = vpop.f32.mrf.mxu0
    %v3010 = vadd.f32 0.0, %v3009
    %3011 = vmatmul.f32.gmra.mxu0 %v2800
    %v3012 = vpop.f32.mrf.mxu0
    %v3013 = vadd.f32 0.0, %v3012
    %3014 = vmatmul.f32.gmra.mxu0 %v2803
    %v3015 = vpop.f32.mrf.mxu0
    %v3016 = vadd.f32 0.0, %v3015
    %3017 = vmatmul.f32.gmra.mxu0 %v2806
    %v3018 = vpop.f32.mrf.mxu0
    %v3019 = vadd.f32 0.0, %v3018
    %3020 = vmatmul.f32.gmra.mxu0 %v2809
    %v3021 = vpop.f32.mrf.mxu0
    %v3022 = vadd.f32 0.0, %v3021
    %3023 = vmatmul.f32.gmra.mxu0 %v2812
    %v3024 = vpop.f32.mrf.mxu0
    %v3025 = vadd.f32 0.0, %v3024
    %3026 = vmatmul.f32.gmra.mxu0 %v2815
    %v3027 = vpop.f32.mrf.mxu0
    %v3028 = vadd.f32 0.0, %v3027
    %3029 = vmatmul.f32.gmra.mxu0 %v2818
    %v3030 = vpop.f32.mrf.mxu0
    %v3031 = vadd.f32 0.0, %v3030
    %3032 = vmatmul.f32.gmra.mxu0 %v2821
    %v3033 = vpop.f32.mrf.mxu0
    %v3034 = vadd.f32 0.0, %v3033
    %3035 = vmatmul.f32.gmra.mxu0 %v2824
    %v3036 = vpop.f32.mrf.mxu0
    %v3037 = vadd.f32 0.0, %v3036
    %3038 = vmatmul.f32.gmra.mxu0 %v2827
    %v3039 = vpop.f32.mrf.mxu0
    %v3040 = vadd.f32 0.0, %v3039
    %3041 = vmatmul.f32.gmra.mxu0 %v2830
    %v3042 = vpop.f32.mrf.mxu0
    %v3043 = vadd.f32 0.0, %v3042
    %3044 = vmatmul.f32.gmra.mxu0 %v2833
    %v3045 = vpop.f32.mrf.mxu0
    %v3046 = vadd.f32 0.0, %v3045
    %3047 = vmatmul.f32.gmra.mxu0 %v2836
    %v3048 = vpop.f32.mrf.mxu0
    %v3049 = vadd.f32 0.0, %v3048
    %3050 = vmatmul.f32.gmra.mxu0 %v2839
    %v3051 = vpop.f32.mrf.mxu0
    %v3052 = vadd.f32 0.0, %v3051
    %3053 = vmatmul.f32.gmra.mxu0 %v2842
    %v3054 = vpop.f32.mrf.mxu0
    %v3055 = vadd.f32 0.0, %v3054
    %3056 = vmatmul.f32.gmra.mxu0 %v2845
    %v3057 = vpop.f32.mrf.mxu0
    %v3058 = vadd.f32 0.0, %v3057
    %3059 = vmatmul.f32.gmra.mxu0 %v2848
    %v3060 = vpop.f32.mrf.mxu0
    %v3061 = vadd.f32 0.0, %v3060
    %3062 = vmatmul.f32.gmra.mxu0 %v2851
    %v3063 = vpop.f32.mrf.mxu0
    %v3064 = vadd.f32 0.0, %v3063
    %3065 = vdwg.mxu0
    %3066 = vxpose.xlu0.b32.start [1/16] %v2875, 128
    %3067 = vxpose.xlu0.b32.cont [2/16] %v2878, 128
    %3068 = vxpose.xlu0.b32.cont [3/16] %v2881, 128
    %3069 = vxpose.xlu0.b32.cont [4/16] %v2884, 128
    %3070 = vxpose.xlu0.b32.cont [5/16] %v2887, 128
    %3071 = vxpose.xlu0.b32.cont [6/16] %v2890, 128
    %3072 = vxpose.xlu0.b32.cont [7/16] %v2893, 128
    %3073 = vxpose.xlu0.b32.cont [8/16] %v2896, 128
    %3074 = vxpose.xlu0.b32.cont [9/16] %v2899, 128
    %3075 = vxpose.xlu0.b32.cont [10/16] %v2902, 128
    %3076 = vxpose.xlu0.b32.cont [11/16] %v2905, 128
    %3077 = vxpose.xlu0.b32.cont [12/16] %v2908, 128
    %3078 = vxpose.xlu0.b32.cont [13/16] %v2911, 128
    %3079 = vxpose.xlu0.b32.cont [14/16] %v2914, 128
    %3080 = vxpose.xlu0.b32.cont [15/16] %v2917, 128
    %3081 = vxpose.xlu0.b32.end [16/16] %v2920, 128
    %v3082 = vpop.trf.xlu0
    %v3083 = vpop.trf.xlu0
    %v3084 = vpop.trf.xlu0
    %v3085 = vpop.trf.xlu0
    %v3086 = vpop.trf.xlu0
    %v3087 = vpop.trf.xlu0
    %v3088 = vpop.trf.xlu0
    %v3089 = vpop.trf.xlu0
    %v3090 = vpop.trf.xlu0
    %v3091 = vpop.trf.xlu0
    %v3092 = vpop.trf.xlu0
    %v3093 = vpop.trf.xlu0
    %v3094 = vpop.trf.xlu0
    %v3095 = vpop.trf.xlu0
    %v3096 = vpop.trf.xlu0
    %v3097 = vpop.trf.xlu0
    %3098 = vxpose.xlu0.b32.start [1/16] %v2923, 128
    %3099 = vxpose.xlu0.b32.cont [2/16] %v2926, 128
    %3100 = vxpose.xlu0.b32.cont [3/16] %v2929, 128
    %3101 = vxpose.xlu0.b32.cont [4/16] %v2932, 128
    %3102 = vxpose.xlu0.b32.cont [5/16] %v2935, 128
    %3103 = vxpose.xlu0.b32.cont [6/16] %v2938, 128
    %3104 = vxpose.xlu0.b32.cont [7/16] %v2941, 128
    %3105 = vxpose.xlu0.b32.cont [8/16] %v2944, 128
    %3106 = vxpose.xlu0.b32.cont [9/16] %v2947, 128
    %3107 = vxpose.xlu0.b32.cont [10/16] %v2950, 128
    %3108 = vxpose.xlu0.b32.cont [11/16] %v2953, 128
    %3109 = vxpose.xlu0.b32.cont [12/16] %v2956, 128
    %3110 = vxpose.xlu0.b32.cont [13/16] %v2959, 128
    %3111 = vxpose.xlu0.b32.cont [14/16] %v2962, 128
    %3112 = vxpose.xlu0.b32.cont [15/16] %v2965, 128
    %3113 = vxpose.xlu0.b32.end [16/16] %v2968, 128
    %v3114 = vpop.trf.xlu0
    %v3115 = vpop.trf.xlu0
    %v3116 = vpop.trf.xlu0
    %v3117 = vpop.trf.xlu0
    %v3118 = vpop.trf.xlu0
    %v3119 = vpop.trf.xlu0
    %v3120 = vpop.trf.xlu0
    %v3121 = vpop.trf.xlu0
    %v3122 = vpop.trf.xlu0
    %v3123 = vpop.trf.xlu0
    %v3124 = vpop.trf.xlu0
    %v3125 = vpop.trf.xlu0
    %v3126 = vpop.trf.xlu0
    %v3127 = vpop.trf.xlu0
    %v3128 = vpop.trf.xlu0
    %v3129 = vpop.trf.xlu0
    %3130 = vxpose.xlu0.b32.start [1/16] %v2971, 128
    %3131 = vxpose.xlu0.b32.cont [2/16] %v2974, 128
    %3132 = vxpose.xlu0.b32.cont [3/16] %v2977, 128
    %3133 = vxpose.xlu0.b32.cont [4/16] %v2980, 128
    %3134 = vxpose.xlu0.b32.cont [5/16] %v2983, 128
    %3135 = vxpose.xlu0.b32.cont [6/16] %v2986, 128
    %3136 = vxpose.xlu0.b32.cont [7/16] %v2989, 128
    %3137 = vxpose.xlu0.b32.cont [8/16] %v2992, 128
    %3138 = vxpose.xlu0.b32.cont [9/16] %v2995, 128
    %3139 = vxpose.xlu0.b32.cont [10/16] %v2998, 128
    %3140 = vxpose.xlu0.b32.cont [11/16] %v3001, 128
    %3141 = vxpose.xlu0.b32.cont [12/16] %v3004, 128
    %3142 = vxpose.xlu0.b32.cont [13/16] %v3007, 128
    %3143 = vxpose.xlu0.b32.cont [14/16] %v3010, 128
    %3144 = vxpose.xlu0.b32.cont [15/16] %v3013, 128
    %3145 = vxpose.xlu0.b32.end [16/16] %v3016, 128
    %v3146 = vpop.trf.xlu0
    %v3147 = vpop.trf.xlu0
    %v3148 = vpop.trf.xlu0
    %v3149 = vpop.trf.xlu0
    %v3150 = vpop.trf.xlu0
    %v3151 = vpop.trf.xlu0
    %v3152 = vpop.trf.xlu0
    %v3153 = vpop.trf.xlu0
    %v3154 = vpop.trf.xlu0
    %v3155 = vpop.trf.xlu0
    %v3156 = vpop.trf.xlu0
    %v3157 = vpop.trf.xlu0
    %v3158 = vpop.trf.xlu0
    %v3159 = vpop.trf.xlu0
    %v3160 = vpop.trf.xlu0
    %v3161 = vpop.trf.xlu0
    %3162 = vxpose.xlu0.b32.start [1/16] %v3019, 128
    %3163 = vxpose.xlu0.b32.cont [2/16] %v3022, 128
    %3164 = vxpose.xlu0.b32.cont [3/16] %v3025, 128
    %3165 = vxpose.xlu0.b32.cont [4/16] %v3028, 128
    %3166 = vxpose.xlu0.b32.cont [5/16] %v3031, 128
    %3167 = vxpose.xlu0.b32.cont [6/16] %v3034, 128
    %3168 = vxpose.xlu0.b32.cont [7/16] %v3037, 128
    %3169 = vxpose.xlu0.b32.cont [8/16] %v3040, 128
    %3170 = vxpose.xlu0.b32.cont [9/16] %v3043, 128
    %3171 = vxpose.xlu0.b32.cont [10/16] %v3046, 128
    %3172 = vxpose.xlu0.b32.cont [11/16] %v3049, 128
    %3173 = vxpose.xlu0.b32.cont [12/16] %v3052, 128
    %3174 = vxpose.xlu0.b32.cont [13/16] %v3055, 128
    %3175 = vxpose.xlu0.b32.cont [14/16] %v3058, 128
    %3176 = vxpose.xlu0.b32.cont [15/16] %v3061, 128
    %3177 = vxpose.xlu0.b32.end [16/16] %v3064, 128
    %v3178 = vpop.trf.xlu0
    %v3179 = vpop.trf.xlu0
    %v3180 = vpop.trf.xlu0
    %v3181 = vpop.trf.xlu0
    %v3182 = vpop.trf.xlu0
    %v3183 = vpop.trf.xlu0
    %v3184 = vpop.trf.xlu0
    %v3185 = vpop.trf.xlu0
    %v3186 = vpop.trf.xlu0
    %v3187 = vpop.trf.xlu0
    %v3188 = vpop.trf.xlu0
    %v3189 = vpop.trf.xlu0
    %v3190 = vpop.trf.xlu0
    %v3191 = vpop.trf.xlu0
    %v3192 = vpop.trf.xlu0
    %v3193 = vpop.trf.xlu0
    %v3194 = vadd.f32 %v3082, %v3114
    %v3195 = vadd.f32 %v3194, %v3146
    %v3196 = vadd.f32 %v3195, %v3178
    %3197 = vadd.xlane.f32.xlu0 %v3196
    %v3198 = vpop.xlane.xlu0 %3197
    %v3199 = vadd.f32 %v3083, %v3115
    %v3200 = vadd.f32 %v3199, %v3147
    %v3201 = vadd.f32 %v3200, %v3179
    %3202 = vadd.xlane.f32.xlu0 %v3201
    %v3203 = vpop.xlane.xlu0 %3202
    %v3204 = vmul.f32 %v3198, 0.001953125
    %v3205 = vmul.f32 %v3203, 0.001953125
    %v3206 = vmul.f32 %v3082, %v3082
    %v3207 = vmul.f32 %v3114, %v3114
    %v3208 = vmul.f32 %v3146, %v3146
    %v3209 = vmul.f32 %v3178, %v3178
    %v3210 = vmul.f32 %v3083, %v3083
    %v3211 = vmul.f32 %v3115, %v3115
    %v3212 = vmul.f32 %v3147, %v3147
    %v3213 = vmul.f32 %v3179, %v3179
    %v3214 = vadd.f32 %v3206, %v3207
    %v3215 = vadd.f32 %v3214, %v3208
    %v3216 = vadd.f32 %v3215, %v3209
    %3217 = vadd.xlane.f32.xlu0 %v3216
    %v3218 = vpop.xlane.xlu0 %3217
    %v3219 = vadd.f32 %v3210, %v3211
    %v3220 = vadd.f32 %v3219, %v3212
    %v3221 = vadd.f32 %v3220, %v3213
    %3222 = vadd.xlane.f32.xlu0 %v3221
    %v3223 = vpop.xlane.xlu0 %3222
    %v3224 = vmul.f32 %v3218, 0.001953125
    %v3225 = vmul.f32 %v3223, 0.001953125
    %v3226 = vmul.f32 %v3204, %v3204
    %v3227 = vmul.f32 %v3205, %v3205
    %v3228 = vsub.f32 %v3224, %v3226
    %v3229 = vsub.f32 %v3225, %v3227
    %v3230 = vld [vmem:[%s3] sm:$0xff]
    %v3231 = vld [vmem:[%s3 + $0x8] sm:$0xff]
    %v3232 = vadd.f32 %v3228, 1e-05
    %v3233 = vadd.f32 %v3229, 1e-05
    %v3234 = vrsqrt.pop %v3232
    %v3235 = vmul.f32 %v3234, %v3232
    %v3236 = vmul.f32 %v3235, %v3234
    %v3237 = vmul.f32 0.5, %v3236
    %v3238 = vsub.f32 1.5, %v3237
    %v3239 = vmul.f32 %v3234, %v3238
    %vm3240 = vweird.f32 %v3232
    %vm3241 = vweird.f32 %v3234
    %vm3242 = vmor %vm3240, %vm3241
    %v3243 = vsel %vm3242, %v3234, %v3239
    %v3244 = vrsqrt.pop %v3233
    %v3245 = vmul.f32 %v3244, %v3233
    %v3246 = vmul.f32 %v3245, %v3244
    %v3247 = vmul.f32 0.5, %v3246
    %v3248 = vsub.f32 1.5, %v3247
    %v3249 = vmul.f32 %v3244, %v3248
    %vm3250 = vweird.f32 %v3233
    %vm3251 = vweird.f32 %v3244
    %vm3252 = vmor %vm3250, %vm3251
    %v3253 = vsel %vm3252, %v3244, %v3249
    %v3254 = vmul.f32 %v3230, %v3243
    %v3255 = vmul.f32 %v3231, %v3253
    %v3256 = vld [vmem:[%s4] sm:$0xff]
    %v3257 = vld [vmem:[%s4 + $0x8] sm:$0xff]
    %v3258 = vmul.f32 %v3204, %v3254
    %v3259 = vmul.f32 %v3205, %v3255
    %v3260 = vsub.f32 %v3256, %v3258
    %v3261 = vsub.f32 %v3257, %v3259
    %3263 = vset.pattern.permute.xlu0 0
    %3264 = vperm.xlu0 %3263, %v3254
    %v3265 = vpop.permute.xlu0 %3264
    %3268 = vset.pattern.permute.xlu0 0
    %3269 = vperm.xlu0 %3268, %v3255
    %v3270 = vpop.permute.xlu0 %3269
    %v3272 = vmul.f32 %v3082, %v3265
    %v3273 = vmul.f32 %v3114, %v3265
    %v3274 = vmul.f32 %v3146, %v3265
    %v3275 = vmul.f32 %v3178, %v3265
    %v3276 = vmul.f32 %v3083, %v3270
    %v3277 = vmul.f32 %v3115, %v3270
    %v3278 = vmul.f32 %v3147, %v3270
    %v3279 = vmul.f32 %v3179, %v3270
    %3281 = vset.pattern.permute.xlu0 0
    %3282 = vperm.xlu0 %3281, %v3260
    %v3283 = vpop.permute.xlu0 %3282
    %3286 = vset.pattern.permute.xlu0 0
    %3287 = vperm.xlu0 %3286, %v3261
    %v3288 = vpop.permute.xlu0 %3287
    %v3290 = vadd.f32 %v3272, %v3283
    %v3291 = vadd.f32 %v3273, %v3283
    %v3292 = vadd.f32 %v3274, %v3283
    %v3293 = vadd.f32 %v3275, %v3283
    %v3294 = vadd.f32 %v3276, %v3288
    %v3295 = vadd.f32 %v3277, %v3288
    %v3296 = vadd.f32 %v3278, %v3288
    %v3297 = vadd.f32 %v3279, %v3288
    %v3298 = vadd.f32 %v3290, %v3294
    %v3299 = vadd.f32 %v3291, %v3295
    %v3300 = vadd.f32 %v3292, %v3296
    %v3301 = vadd.f32 %v3293, %v3297
    %v3302 = vmax.f32 %v3298, 0.0
    %v3303 = vmax.f32 %v3299, 0.0
    %v3304 = vmax.f32 %v3300, 0.0
    %v3305 = vmax.f32 %v3301, 0.0
    %3306 = vst [vmem:[#allocation2] sm:$0xff] %v3302
    %3307 = vst [vmem:[#allocation2 + $0x8] sm:$0xff] %v3303
    %3308 = vst [vmem:[#allocation2 + $0x10] sm:$0xff] %v3304
    %3309 = vst [vmem:[#allocation2 + $0x18] sm:$0xff] %v3305
    // Predicated region
    $region22: #{tpu_custom_call.1} parent=1 // pred_check
      _
    $region23: #{tpu_custom_call.1} parent=1 // pred_check_branch
      %3311 = sbr.rel (0) target = $region25
    $region24: #{tpu_custom_call.1} parent=1 // pred_region
      %3313 = vsyncadd [#allocation3], 0
      %s3315 = sshll.u32 [#allocation2], 4
      %s3316 = int_to_ptr.vmem [resolvable:$true] %s3315
      %s3317 = sshll.u32 %s5, 4
      %s3318 = int_to_ptr.hbm [resolvable:$true] %s3317
      %3320 = dma.vmem_to_hbm [thread:$0]  %s3316, 512, %s3318, [#allocation3]
    $region25: #{tpu_custom_call.1} parent=1 // pred_fallthru
      _
    // Predicated region
    $region26: #{tpu_custom_call.1} parent=1 // pred_check
      _
    $region27: #{tpu_custom_call.1} parent=1 // pred_check_branch
      %3322 = sbr.rel (0) target = $region29
    $region28: #{tpu_custom_call.1} parent=1 // pred_region
      %3324 = dma.done [#allocation3], 512
    $region29: #{tpu_custom_call.1} parent=1 // pred_fallthru
      _
    %3325 = vsyncpa [#allocation3], 1

</llo_original>
